<compile_context>
chip_gen: v7x
topology: tpu7x:2x2x1
jax: 0.10.0
libtpu: 0.0.40
codegen_flags: <defaults>
</compile_context>

<pallas_src>
import functools

import jax
import jax.numpy as jnp
from jax.experimental import pallas as pl
from jax.experimental.pallas import tpu as pltpu


def _round_up(x, m):
    return (x + m - 1) // m * m


def _row_tile(M, cap=512):
    """Row tile: multiple of 8 (or whole dim if small), plus padded row count."""
    Mp8 = _round_up(M, 8)
    tm = Mp8 if Mp8 <= cap else 256
    return tm, _round_up(M, tm)


def _col_tile(dim, cap):
    """Lane-dim tile: multiple of 128 dividing the (minimally) padded dim, capped."""
    if dim < 128:
        return dim, dim                      # full-dim block (allowed when == array dim)
    p = _round_up(dim, 128)
    q = p // 128
    best = 1
    for d in range(1, cap // 128 + 1):
        if q % d == 0:
            best = d
    return p, best * 128


_VMEM_LIMIT = 32 * 1024 * 1024               # fits v7x (64 MiB physical) with headroom

_MM_PARAMS = pltpu.CompilerParams(
    dimension_semantics=("parallel", "parallel", "arbitrary"),
    vmem_limit_bytes=_VMEM_LIMIT)
_EW_PARAMS = pltpu.CompilerParams(
    dimension_semantics=("parallel", "parallel"),
    vmem_limit_bytes=_VMEM_LIMIT)
_RED_PARAMS = pltpu.CompilerParams(
    dimension_semantics=("parallel", "arbitrary"),
    vmem_limit_bytes=_VMEM_LIMIT)
_BN1_PARAMS = pltpu.CompilerParams(
    dimension_semantics=("parallel",),
    vmem_limit_bytes=_VMEM_LIMIT)


# ----------------------------------------------------------------------------
# GEMM kernels: bf16 operands, f32 MXU accumulation, bf16 (or f32) writeback
# ----------------------------------------------------------------------------
def _matmul_kernel(a_ref, b_ref, o_ref, acc_ref):
    @pl.when(pl.program_id(2) == 0)
    def _():
        acc_ref[...] = jnp.zeros_like(acc_ref)

    acc_ref[...] += jnp.dot(a_ref[...], b_ref[...],
                            preferred_element_type=jnp.float32)

    @pl.when(pl.program_id(2) == pl.num_programs(2) - 1)
    def _():
        o_ref[...] = acc_ref[...].astype(o_ref.dtype)


def _matmul_bias_kernel(a_ref, b_ref, bias_ref, o_ref, acc_ref):
    @pl.when(pl.program_id(2) == 0)
    def _():
        acc_ref[...] = jnp.zeros_like(acc_ref)

    acc_ref[...] += jnp.dot(a_ref[...], b_ref[...],
                            preferred_element_type=jnp.float32)

    @pl.when(pl.program_id(2) == pl.num_programs(2) - 1)
    def _():
        o_ref[...] = (acc_ref[...] + bias_ref[...]).astype(o_ref.dtype)


def pallas_matmul(a, b, bias=None, out_dtype=jnp.bfloat16):
    """a: [M, K] bf16, b: [K, N] bf16, bias: [N] f32|None -> [M, N] out_dtype."""
    M, K = a.shape
    K2, N = b.shape
    assert K == K2
    if a.dtype != jnp.bfloat16:
        a = a.astype(jnp.bfloat16)
    if b.dtype != jnp.bfloat16:
        b = b.astype(jnp.bfloat16)

    tm, Mp = _row_tile(M, cap=512)
    Kp, tk = _col_tile(K, cap=2048)
    Np, tn = _col_tile(N, cap=2048)          # expander: 4 N-blocks (>=2 for v7x 2-TC)

    a_p = a if (Mp == M and Kp == K) else jnp.pad(a, ((0, Mp - M), (0, Kp - K)))
    b_p = b if (Kp == K and Np == N) else jnp.pad(b, ((0, Kp - K), (0, Np - N)))

    in_specs = [pl.BlockSpec((tm, tk), lambda i, j, k: (i, k)),
                pl.BlockSpec((tk, tn), lambda i, j, k: (k, j))]
    if bias is None:
        kernel = _matmul_kernel
        operands = (a_p, b_p)
    else:
        bias = bias.astype(jnp.float32)
        bias_p = (bias if Np == N else jnp.pad(bias, (0, Np - N))).reshape(1, Np)
        kernel = _matmul_bias_kernel
        in_specs = in_specs + [pl.BlockSpec((1, tn), lambda i, j, k: (0, j))]
        operands = (a_p, b_p, bias_p)

    grid = (Mp // tm, Np // tn, Kp // tk)
    out = pl.pallas_call(
        kernel,
        out_shape=jax.ShapeDtypeStruct((Mp, Np), out_dtype),
        grid_spec=pltpu.PrefetchScalarGridSpec(
            num_scalar_prefetch=0,
            grid=grid,
            in_specs=in_specs,
            out_specs=pl.BlockSpec((tm, tn), lambda i, j, k: (i, j)),
            scratch_shapes=[pltpu.VMEM((tm, tn), jnp.float32)]),
        compiler_params=_MM_PARAMS,
    )(*operands)
    if Mp > M or Np > N:
        out = out[:M, :N]
    return out


# ----------------------------------------------------------------------------
# BatchNorm (train mode): fused single-pass when all rows fit one tile,
# two-pass row-tiled fallback otherwise.  Residual add + ReLU fused in.
# ----------------------------------------------------------------------------
def _bn_fused_kernel(x_ref, g_ref, b_ref, o_ref, *, count, eps, relu):
    x = x_ref[...].astype(jnp.float32)
    inv = 1.0 / count
    mean = jnp.sum(x, axis=0, keepdims=True) * inv
    var = jnp.maximum(jnp.sum(x * x, axis=0, keepdims=True) * inv - mean * mean, 0.0)
    scale = g_ref[...] * jax.lax.rsqrt(var + eps)
    shift = b_ref[...] - mean * scale
    y = x * scale + shift
    if relu:
        y = jnp.maximum(y, 0.0)
    o_ref[...] = y.astype(o_ref.dtype)


def _bn_fused_res_kernel(x_ref, g_ref, b_ref, r_ref, o_ref, *, count, eps, relu):
    x = x_ref[...].astype(jnp.float32)
    inv = 1.0 / count
    mean = jnp.sum(x, axis=0, keepdims=True) * inv
    var = jnp.maximum(jnp.sum(x * x, axis=0, keepdims=True) * inv - mean * mean, 0.0)
    scale = g_ref[...] * jax.lax.rsqrt(var + eps)
    shift = b_ref[...] - mean * scale
    y = x * scale + shift + r_ref[...].astype(jnp.float32)
    if relu:
        y = jnp.maximum(y, 0.0)
    o_ref[...] = y.astype(o_ref.dtype)


def _bn_stats_kernel(x_ref, g_ref, b_ref, scale_ref, shift_ref,
                     sum_ref, sq_ref, *, count, eps):
    @pl.when(pl.program_id(1) == 0)
    def _():
        sum_ref[...] = jnp.zeros_like(sum_ref)
        sq_ref[...] = jnp.zeros_like(sq_ref)

    x = x_ref[...].astype(jnp.float32)
    sum_ref[...] += jnp.sum(x, axis=0, keepdims=True)
    sq_ref[...] += jnp.sum(x * x, axis=0, keepdims=True)

    @pl.when(pl.program_id(1) == pl.num_programs(1) - 1)
    def _():
        inv = 1.0 / count
        mean = sum_ref[...] * inv
        var = jnp.maximum(sq_ref[...] * inv - mean * mean, 0.0)   # biased var (train mode)
        scale = g_ref[...] * jax.lax.rsqrt(var + eps)
        scale_ref[...] = scale
        shift_ref[...] = b_ref[...] - mean * scale


def _bn_apply_kernel(x_ref, s_ref, t_ref, o_ref, *, relu):
    y = x_ref[...].astype(jnp.float32) * s_ref[...] + t_ref[...]
    if relu:
        y = jnp.maximum(y, 0.0)
    o_ref[...] = y.astype(o_ref.dtype)


def _bn_apply_res_kernel(x_ref, s_ref, t_ref, r_ref, o_ref, *, relu):
    y = (x_ref[...].astype(jnp.float32) * s_ref[...] + t_ref[...]
         + r_ref[...].astype(jnp.float32))
    if relu:
        y = jnp.maximum(y, 0.0)
    o_ref[...] = y.astype(o_ref.dtype)


def pallas_batchnorm(x2d, gamma, beta, residual=None, relu=True, eps=1e-5,
                     out_dtype=jnp.bfloat16):
    """Train-mode BatchNorm over rows of x2d [M, C] + optional residual add + ReLU."""
    M, C = x2d.shape
    tm, Mp = _row_tile(M, cap=512)
    Cp, tc = _col_tile(C, cap=2048)

    # NOTE: rows/channels are padded with ZEROS.  With count=M the zero rows do not
    # perturb sum/sumsq, so batch statistics stay exact.  Do not change the pad value.
    x_p = x2d if (Mp == M and Cp == C) else jnp.pad(x2d, ((0, Mp - M), (0, Cp - C)))
    g_p = (gamma if Cp == C else jnp.pad(gamma, (0, Cp - C))).reshape(1, Cp)
    g_p = g_p.astype(jnp.float32)
    b_p = (beta if Cp == C else jnp.pad(beta, (0, Cp - C))).reshape(1, Cp)
    b_p = b_p.astype(jnp.float32)
    r_p = None
    if residual is not None:
        r_p = residual if (Mp == M and Cp == C) else jnp.pad(
            residual, ((0, Mp - M), (0, Cp - C)))

    if Mp == tm:
        # Fused single-pass BN: the whole batch (all rows) is resident in one tile, so
        # stats + normalize (+residual) (+ReLU) happen in ONE kernel with ONE read of x.
        x_spec = pl.BlockSpec((tm, tc), lambda c: (0, c))
        v_spec = pl.BlockSpec((1, tc), lambda c: (0, c))
        if residual is None:
            y = pl.pallas_call(
                functools.partial(_bn_fused_kernel, count=float(M), eps=eps, relu=relu),
                out_shape=jax.ShapeDtypeStruct((Mp, Cp), out_dtype),
                grid_spec=pltpu.PrefetchScalarGridSpec(
                    num_scalar_prefetch=0, grid=(Cp // tc,),
                    in_specs=[x_spec, v_spec, v_spec],
                    out_specs=x_spec),
                compiler_params=_BN1_PARAMS,
            )(x_p, g_p, b_p)
        else:
            y = pl.pallas_call(
                functools.partial(_bn_fused_res_kernel, count=float(M), eps=eps,
                                  relu=relu),
                out_shape=jax.ShapeDtypeStruct((Mp, Cp), out_dtype),
                grid_spec=pltpu.PrefetchScalarGridSpec(
                    num_scalar_prefetch=0, grid=(Cp // tc,),
                    in_specs=[x_spec, v_spec, v_spec, x_spec],
                    out_specs=x_spec),
                compiler_params=_BN1_PARAMS,
            )(x_p, g_p, b_p, r_p)
    else:
        # Two-pass fallback: row-tiled stats accumulation, then tiled apply.
        scale, shift = pl.pallas_call(
            functools.partial(_bn_stats_kernel, count=float(M), eps=eps),
            out_shape=(jax.ShapeDtypeStruct((1, Cp), jnp.float32),
                       jax.ShapeDtypeStruct((1, Cp), jnp.float32)),
            grid_spec=pltpu.PrefetchScalarGridSpec(
                num_scalar_prefetch=0,
                grid=(Cp // tc, Mp // tm),                       # reduction (rows) last
                in_specs=[pl.BlockSpec((tm, tc), lambda c, m: (m, c)),
                          pl.BlockSpec((1, tc), lambda c, m: (0, c)),
                          pl.BlockSpec((1, tc), lambda c, m: (0, c))],
                out_specs=[pl.BlockSpec((1, tc), lambda c, m: (0, c)),
                           pl.BlockSpec((1, tc), lambda c, m: (0, c))],
                scratch_shapes=[pltpu.VMEM((1, tc), jnp.float32),
                                pltpu.VMEM((1, tc), jnp.float32)]),
            compiler_params=_RED_PARAMS,
        )(x_p, g_p, b_p)

        grid2 = (Mp // tm, Cp // tc)
        if residual is None:
            y = pl.pallas_call(
                functools.partial(_bn_apply_kernel, relu=relu),
                out_shape=jax.ShapeDtypeStruct((Mp, Cp), out_dtype),
                grid_spec=pltpu.PrefetchScalarGridSpec(
                    num_scalar_prefetch=0, grid=grid2,
                    in_specs=[pl.BlockSpec((tm, tc), lambda m, c: (m, c)),
                              pl.BlockSpec((1, tc), lambda m, c: (0, c)),
                              pl.BlockSpec((1, tc), lambda m, c: (0, c))],
                    out_specs=pl.BlockSpec((tm, tc), lambda m, c: (m, c))),
                compiler_params=_EW_PARAMS,
            )(x_p, scale, shift)
        else:
            y = pl.pallas_call(
                functools.partial(_bn_apply_res_kernel, relu=relu),
                out_shape=jax.ShapeDtypeStruct((Mp, Cp), out_dtype),
                grid_spec=pltpu.PrefetchScalarGridSpec(
                    num_scalar_prefetch=0, grid=grid2,
                    in_specs=[pl.BlockSpec((tm, tc), lambda m, c: (m, c)),
                              pl.BlockSpec((1, tc), lambda m, c: (0, c)),
                              pl.BlockSpec((1, tc), lambda m, c: (0, c)),
                              pl.BlockSpec((tm, tc), lambda m, c: (m, c))],
                    out_specs=pl.BlockSpec((tm, tc), lambda m, c: (m, c))),
                compiler_params=_EW_PARAMS,
            )(x_p, scale, shift, r_p)

    if Mp > M or Cp > C:
        y = y[:M, :C]
    return y


# ----------------------------------------------------------------------------
# MaxPool 3x3/2/1 (NHWC): tap index is a grid reduction axis (small VMEM blocks)
# ----------------------------------------------------------------------------
def _maxpool_tap_kernel(x_ref, o_ref):
    t = pl.program_id(2)

    @pl.when(t == 0)
    def _():
        o_ref[...] = x_ref[0]

    @pl.when(t > 0)
    def _():
        o_ref[...] = jnp.maximum(o_ref[...], x_ref[0])


def pallas_maxpool2d_nhwc(x, k=3, stride=2, padding=1):
    """MaxPool2d(k, stride, padding) on NHWC input (-inf padding, like PyTorch)."""
    # TODO(synk): fuse tap extraction into the kernel (manual strided DMA) to avoid
    # materializing the k*k tap stack in HBM at real image sizes.
    N, H, W, C = x.shape
    xp = jnp.pad(x, ((0, 0), (padding, padding), (padding, padding), (0, 0)),
                 constant_values=-jnp.inf)
    Ho = (H + 2 * padding - k) // stride + 1
    Wo = (W + 2 * padding - k) // stride + 1
    taps = []
    for i in range(k):
        for j in range(k):
            taps.append(jax.lax.slice(
                xp, (0, i, j, 0),
                (N, i + stride * (Ho - 1) + 1, j + stride * (Wo - 1) + 1, C),
                (1, stride, stride, 1)))
    M = N * Ho * Wo
    stacked = jnp.stack(taps, axis=0).reshape(k * k, M, C)

    tm, Mp = _row_tile(M, cap=512)
    Cp, tc = _col_tile(C, cap=2048)
    if Mp > M or Cp > C:
        stacked = jnp.pad(stacked, ((0, 0), (0, Mp - M), (0, Cp - C)))

    out = pl.pallas_call(
        _maxpool_tap_kernel,
        out_shape=jax.ShapeDtypeStruct((Mp, Cp), x.dtype),
        grid_spec=pltpu.PrefetchScalarGridSpec(
            num_scalar_prefetch=0,
            grid=(Mp // tm, Cp // tc, k * k),                    # tap reduction axis last
            in_specs=[pl.BlockSpec((1, tm, tc), lambda m, c, t: (t, m, c))],
            out_specs=pl.BlockSpec((tm, tc), lambda m, c, t: (m, c))),
        compiler_params=_MM_PARAMS,
    )(stacked)
    if Mp > M or Cp > C:
        out = out[:M, :C]
    return out.reshape(N, Ho, Wo, C)


# ----------------------------------------------------------------------------
# Conv / BN glue (NHWC; im2col only for k>1 convs, stays in the bf16 activation dtype)
# ----------------------------------------------------------------------------
def _im2col_nhwc(x, kh, kw, stride, padding):
    N, H, W, C = x.shape
    xp = jnp.pad(x, ((0, 0), (padding, padding), (padding, padding), (0, 0)))
    Ho = (H + 2 * padding - kh) // stride + 1
    Wo = (W + 2 * padding - kw) // stride + 1
    taps = []
    for i in range(kh):
        for j in range(kw):
            taps.append(jax.lax.slice(
                xp, (0, i, j, 0),
                (N, i + stride * (Ho - 1) + 1, j + stride * (Wo - 1) + 1, C),
                (1, stride, stride, 1)))
    cols = jnp.stack(taps, axis=3)                               # [N, Ho, Wo, kh*kw, C]
    return cols.reshape(N * Ho * Wo, kh * kw * C), Ho, Wo


def conv2d(x, wp, stride, padding):
    """x: [N, H, W, Cin] bf16 NHWC; wp: dict with bf16 GEMM-layout weight; bias-free."""
    kh, kw, cin, cout = wp['kh'], wp['kw'], wp['cin'], wp['cout']
    N = x.shape[0]
    if kh == 1 and kw == 1:
        # 1x1 conv (padding is always 0 in ResNet): direct GEMM, stride = spatial subsample.
        xs = x[:, ::stride, ::stride, :] if stride > 1 else x
        Ho, Wo = xs.shape[1], xs.shape[2]
        cols = xs.reshape(N * Ho * Wo, cin)
    else:
        cols, Ho, Wo = _im2col_nhwc(x, kh, kw, stride, padding)
    out = pallas_matmul(cols, wp['w'])                           # [N*Ho*Wo, Cout] bf16
    return out.reshape(N, Ho, Wo, cout)


def batchnorm2d(x, gamma, beta, residual=None, relu=True):
    N, H, W, C = x.shape
    x2d = x.reshape(N * H * W, C)                                # free reshape (NHWC)
    r2d = residual.reshape(N * H * W, C) if residual is not None else None
    y = pallas_batchnorm(x2d, gamma, beta, residual=r2d, relu=relu)
    return y.reshape(N, H, W, C)


# ----------------------------------------------------------------------------
# Deterministic parameter construction (synthetic init, not a checkpoint load)
# Weights stored in bf16 and GEMM-ready layout AT REST: no per-forward casts/transposes.
# ----------------------------------------------------------------------------
class KeyGen:
    def __init__(self, seed):
        self.key = jax.random.PRNGKey(seed)

    def __call__(self):
        self.key, sub = jax.random.split(self.key)
        return sub


def conv_params(kg, cout, cin, kh, kw):
    fan_in = cin * kh * kw
    w = jax.random.normal(kg(), (cout, cin, kh, kw), jnp.float32) * (2.0 / fan_in) ** 0.5
    wmat = w.transpose(2, 3, 1, 0).reshape(kh * kw * cin, cout).astype(jnp.bfloat16)
    return {'w': wmat, 'kh': kh, 'kw': kw, 'cin': cin, 'cout': cout}


def bn_params(c):
    return jnp.ones((c,), jnp.float32), jnp.zeros((c,), jnp.float32)


def make_bottleneck(kg, inplanes, planes, stride, downsample):
    p = {
        'conv1': conv_params(kg, planes, inplanes, 1, 1), 'bn1': bn_params(planes),
        'conv2': conv_params(kg, planes, planes, 3, 3),   'bn2': bn_params(planes),
        'conv3': conv_params(kg, planes * 4, planes, 1, 1), 'bn3': bn_params(planes * 4),
        'stride': stride,
    }
    if downsample:
        p['ds_conv'] = conv_params(kg, planes * 4, inplanes, 1, 1)
        p['ds_bn'] = bn_params(planes * 4)
    return p


def make_resnet50_params(kg):
    params = {'conv1': conv_params(kg, 64, 3, 7, 7), 'bn1': bn_params(64)}
    layers = []
    inplanes = 64
    for planes, blocks, stride in [(64, 3, 1), (128, 4, 2), (256, 6, 2), (512, 3, 2)]:
        blist = []
        for b in range(blocks):
            s = stride if b == 0 else 1
            blist.append(make_bottleneck(kg, inplanes, planes, s, downsample=(b == 0)))
            inplanes = planes * 4
        layers.append(blist)
    params['layers'] = layers
    return params


def make_expander_params(kg):
    def linear(cin, cout):
        w = (jax.random.normal(kg(), (cin, cout), jnp.float32)
             * (1.0 / cin) ** 0.5).astype(jnp.bfloat16)           # bf16 at rest
        b = jax.random.normal(kg(), (cout,), jnp.float32) * 0.01  # f32 bias (f32 epilogue)
        return w, b
    return {
        'fc1': linear(2048, 8192), 'bn1': bn_params(8192),
        'fc2': linear(8192, 8192), 'bn2': bn_params(8192),
        'fc3': linear(8192, 8192),
    }


# ----------------------------------------------------------------------------
# Forward pass
# ----------------------------------------------------------------------------
def bottleneck_forward(x, p):
    identity = x
    out = conv2d(x, p['conv1'], stride=1, padding=0)
    out = batchnorm2d(out, *p['bn1'], relu=True)
    out = conv2d(out, p['conv2'], stride=p['stride'], padding=1)
    out = batchnorm2d(out, *p['bn2'], relu=True)
    out = conv2d(out, p['conv3'], stride=1, padding=0)
    if 'ds_conv' in p:
        identity = conv2d(x, p['ds_conv'], stride=p['stride'], padding=0)
        identity = batchnorm2d(identity, *p['ds_bn'], relu=False)
    # bn3 -> residual add -> ReLU (fused in the single-pass Pallas BN kernel)
    out = batchnorm2d(out, *p['bn3'], residual=identity, relu=True)
    return out


def sicova_forward(x_nchw, enc, exp):
    # ---- encoder: truncated ResNet50 (children()[:-1]) + Flatten ----
    x = x_nchw.transpose(0, 2, 3, 1).astype(jnp.bfloat16)  # NCHW->NHWC + bf16 once
    h = conv2d(x, enc['conv1'], stride=2, padding=3)
    h = batchnorm2d(h, *enc['bn1'], relu=True)
    h = pallas_maxpool2d_nhwc(h, k=3, stride=2, padding=1)
    for layer in enc['layers']:
        for blk in layer:
            h = bottleneck_forward(h, blk)
    N, H, W, C = h.shape
    # AdaptiveAvgPool2d(1) + Flatten (H=W=1 here, so this is just reshape/mean glue)
    repr_ = h.reshape(N, H * W, C).astype(jnp.float32).mean(axis=1)
    repr_ = repr_.astype(jnp.bfloat16)                     # [N, 2048] bf16

    # ---- expander: Linear/BN1d/ReLU x2 + Linear ----
    w1, b1 = exp['fc1']
    e = pallas_matmul(repr_, w1, b1)
    e = pallas_batchnorm(e, *exp['bn1'], relu=True)
    w2, b2 = exp['fc2']
    e = pallas_matmul(e, w2, b2)
    e = pallas_batchnorm(e, *exp['bn2'], relu=True)
    w3, b3 = exp['fc3']
    e = pallas_matmul(e, w3, b3, out_dtype=jnp.float32)    # final output in f32
    return e                                               # [N, 8192]


if __name__ == "__main__":
    # Deterministic parameters (synthetic; shapes match the PyTorch module).
    kg = KeyGen(1)
    enc_params = make_resnet50_params(kg)
    exp_params = make_expander_params(kg)

    # Small input consistent with the module: [batch=2, 3, 32, 32] (32 = min multiple of stride-32).
    x = jax.random.normal(jax.random.PRNGKey(0), (2, 3, 32, 32), jnp.float32)

    out = sicova_forward(x, enc_params, exp_params)
    out = jax.block_until_ready(out)

    assert out.shape == (2, 8192), out.shape
    assert bool(jnp.all(jnp.isfinite(out)))
    print("KERNEL_OK")
</pallas_src>

<mosaic_0001>
module attributes {stable_mosaic.version = 11 : i64} {
  func.func @_matmul_kernel(%arg0: i32, %arg1: i32, %arg2: i32, %arg3: memref<512x256xbf16, #tpu.memory_space<vmem>>, %arg4: memref<256x64xbf16, #tpu.memory_space<vmem>>, %arg5: memref<512x64xbf16, #tpu.memory_space<vmem>>, %arg6: memref<512x64xf32, #tpu.memory_space<vmem>>) attributes {dimension_semantics = [#tpu.dimension_semantics<parallel>, #tpu.dimension_semantics<parallel>, #tpu.dimension_semantics<arbitrary>], iteration_bounds = array<i64: 1, 1, 1>, scalar_prefetch = 0 : i64, scratch_operands = 1 : i64, tpu.core_type = #tpu.core_type<tc>, window_params = [{transform_indices = @transform_0, window_bounds = array<i64: 512, 256>}, {transform_indices = @transform_1, window_bounds = array<i64: 256, 64>}, {transform_indices = @transform_2, window_bounds = array<i64: 512, 64>}]} {
    %c0_i32 = arith.constant 0 : i32
    %0 = arith.cmpi eq, %arg2, %c0_i32 : i32
    %1 = arith.extui %0 : i1 to i32
    %c0_i32_0 = arith.constant 0 : i32
    %2 = arith.cmpi ne, %1, %c0_i32_0 : i32
    scf.if %2 {
      %cst_10 = arith.constant 0.000000e+00 : f32
      %12 = vector.broadcast %cst_10 : f32 to vector<512x64xf32>
      %c0_11 = arith.constant 0 : index
      %c0_12 = arith.constant 0 : index
      %13 = vector.load %arg6[%c0_11, %c0_12] : memref<512x64xf32, #tpu.memory_space<vmem>>, vector<512x64xf32>
      tpu.vector_store %arg6[%c0_11, %c0_12], %12 {strides = array<i32>} : memref<512x64xf32, #tpu.memory_space<vmem>>, vector<512x64xf32>,
    } else {
    }
    %c0 = arith.constant 0 : index
    %c0_1 = arith.constant 0 : index
    %3 = vector.load %arg6[%c0, %c0_1] : memref<512x64xf32, #tpu.memory_space<vmem>>, vector<512x64xf32>
    %c0_2 = arith.constant 0 : index
    %c0_3 = arith.constant 0 : index
    %4 = vector.load %arg3[%c0_2, %c0_3] : memref<512x256xbf16, #tpu.memory_space<vmem>>, vector<512x256xbf16>
    %c0_4 = arith.constant 0 : index
    %c0_5 = arith.constant 0 : index
    %5 = vector.load %arg4[%c0_4, %c0_5] : memref<256x64xbf16, #tpu.memory_space<vmem>>, vector<256x64xbf16>
    %cst = arith.constant dense<0.000000e+00> : vector<512x64xf32>
    %6 = tpu.matmul %4, %5, %cst {dimension_numbers = #tpu.dot_dimension_numbers<[1], [0], [0], [1], [0, 0, 1, 1], [], []>} : vector<512x256xbf16>, vector<256x64xbf16>, vector<512x64xf32> -> vector<512x64xf32>
    %7 = arith.addf %3, %6 : vector<512x64xf32>
    %c0_6 = arith.constant 0 : index
    %c0_7 = arith.constant 0 : index
    %8 = vector.load %arg6[%c0_6, %c0_7] : memref<512x64xf32, #tpu.memory_space<vmem>>, vector<512x64xf32>
    tpu.vector_store %arg6[%c0_6, %c0_7], %7 {strides = array<i32>} : memref<512x64xf32, #tpu.memory_space<vmem>>, vector<512x64xf32>,
    %c0_i32_8 = arith.constant 0 : i32
    %9 = arith.cmpi eq, %arg2, %c0_i32_8 : i32
    %10 = arith.extui %9 : i1 to i32
    %c0_i32_9 = arith.constant 0 : i32
    %11 = arith.cmpi ne, %10, %c0_i32_9 : i32
    scf.if %11 {
      %c0_10 = arith.constant 0 : index
      %c0_11 = arith.constant 0 : index
      %12 = vector.load %arg6[%c0_10, %c0_11] : memref<512x64xf32, #tpu.memory_space<vmem>>, vector<512x64xf32>
      %13 = arith.truncf %12 : vector<512x64xf32> to vector<512x64xbf16>
      %c0_12 = arith.constant 0 : index
      %c0_13 = arith.constant 0 : index
      %14 = vector.load %arg5[%c0_12, %c0_13] : memref<512x64xbf16, #tpu.memory_space<vmem>>, vector<512x64xbf16>
      tpu.vector_store %arg5[%c0_12, %c0_13], %13 {strides = array<i32>} : memref<512x64xbf16, #tpu.memory_space<vmem>>, vector<512x64xbf16>,
    } else {
    }
    return
  }
  func.func @transform_0(%arg0: i32, %arg1: i32, %arg2: i32) -> (i32, i32) {
    %c0_i32 = arith.constant 0 : i32
    return %arg0, %arg2 : i32, i32
  }
  func.func @transform_1(%arg0: i32, %arg1: i32, %arg2: i32) -> (i32, i32) {
    %c0_i32 = arith.constant 0 : i32
    return %arg2, %arg1 : i32, i32
  }
  func.func @transform_2(%arg0: i32, %arg1: i32, %arg2: i32) -> (i32, i32) {
    %c0_i32 = arith.constant 0 : i32
    return %arg0, %arg1 : i32, i32
  }
}

</mosaic_0001>

<llo_original>
// kernel: tpu_custom_call.1
$region0: #{tpu_custom_call.1}
  #allocation0 [shape = 'u32[]', space=smem, size = 0x4, offset = 0x4, fixed_abs, tag = 'smem constant byte address 0x4 - core index']
  #allocation1 [shape = 'u32[144,128]{1,0:T(1,128)}', space=vmem, size = 0x12000, scoped, tag = 'internal scratch']
  #allocation2 [shape = 'f32[512,64]{1,0:T(8,128)}', space=vmem, size = 0x40000, scoped, tag = 'scratch operand']
  %s0 = inlined_call_operand.hbm [shape: bf16[512,256], index: 0, kind: input, shape index: {}]
  %s1 = inlined_call_operand.vmem [shape: bf16[256,64], index: 1, kind: input, shape index: {}]
  %s2 = inlined_call_operand.vmem [shape: bf16[512,64], index: 2, kind: output, shape index: {}]
  %s3 = sld [smem:[#allocation0]]
  $region30: #{tpu_custom_call.1} parent=0
    _
  %s5 = ssub.s32 1, %s3
  %s6 = scalar_select 0, %s5, %s3
  $region1: #{tpu_custom_call.1} parent=0
    #allocation3 [shape = 'u8[262144]{0}', space=vmem, size = 0x40000, scoped, tag = 'input window, operand 0, single buffered']
    #allocation4 [shape = 's32[1]{0}', space=sflag, size = 0x4, scoped, tag = 'scoped memory for tpu_custom_call.1']
    %7 = vsyncpa [#allocation4], 0
    // Predicated region
    $region2: #{tpu_custom_call.1} parent=1 // pred_check
      _
    $region3: #{tpu_custom_call.1} parent=1 // pred_check_branch
      %9 = sbr.rel (0) target = $region5
    $region4: #{tpu_custom_call.1} parent=1 // pred_region
      %s11 = ssub.s32 8192, 8192
      %12 = vsyncadd [#allocation4], %s11
      %s13 = sshll.u32 [#allocation3], 4
      %s14 = int_to_ptr.vmem [resolvable:$true] %s13
      %19 = dma.hbm_to_vmem [thread:$0]  %s0, 8192, %s14, [#allocation4], 128, 128, 8
    $region5: #{tpu_custom_call.1} parent=1 // pred_fallthru
      _
    // Predicated region
    $region6: #{tpu_custom_call.1} parent=1 // pred_check
      _
    $region7: #{tpu_custom_call.1} parent=1 // pred_check_branch
      %21 = sbr.rel (0) target = $region9
    $region8: #{tpu_custom_call.1} parent=1 // pred_region
      _
    $region9: #{tpu_custom_call.1} parent=1 // pred_fallthru
      _
    // Predicated region
    $region10: #{tpu_custom_call.1} parent=1 // pred_check
      _
    $region11: #{tpu_custom_call.1} parent=1 // pred_check_branch
      %23 = sbr.rel (0) target = $region13
    $region12: #{tpu_custom_call.1} parent=1 // pred_region
      %24 = dma.done [#allocation4], 8192
    $region13: #{tpu_custom_call.1} parent=1 // pred_fallthru
      _
    %p26 = scmp.eq.s32.totalorder 0, 0
    // Predicated region
    $region14: #{tpu_custom_call.1} parent=1 // pred_check
      %p27 = pneg %p26
    $region15: #{tpu_custom_call.1} parent=1 // pred_check_branch
      %29 = sbr.rel (%p27) target = $region17
    $region16: #{tpu_custom_call.1} parent=1 // pred_region
      %vm30 = vcmask 523264
      %31 = vst.msk [vmem:[#allocation2] sm:$0xff] %vm30, 0.0
      %32 = vst.msk [vmem:[#allocation2 + $0x8] sm:$0xff] %vm30, 0.0
      %33 = vst.msk [vmem:[#allocation2 + $0x10] sm:$0xff] %vm30, 0.0
      %34 = vst.msk [vmem:[#allocation2 + $0x18] sm:$0xff] %vm30, 0.0
      %35 = vst.msk [vmem:[#allocation2 + $0x20] sm:$0xff] %vm30, 0.0
      %36 = vst.msk [vmem:[#allocation2 + $0x28] sm:$0xff] %vm30, 0.0
      %37 = vst.msk [vmem:[#allocation2 + $0x30] sm:$0xff] %vm30, 0.0
      %38 = vst.msk [vmem:[#allocation2 + $0x38] sm:$0xff] %vm30, 0.0
      %39 = vst.msk [vmem:[#allocation2 + $0x40] sm:$0xff] %vm30, 0.0
      %40 = vst.msk [vmem:[#allocation2 + $0x48] sm:$0xff] %vm30, 0.0
      %41 = vst.msk [vmem:[#allocation2 + $0x50] sm:$0xff] %vm30, 0.0
      %42 = vst.msk [vmem:[#allocation2 + $0x58] sm:$0xff] %vm30, 0.0
      %43 = vst.msk [vmem:[#allocation2 + $0x60] sm:$0xff] %vm30, 0.0
      %44 = vst.msk [vmem:[#allocation2 + $0x68] sm:$0xff] %vm30, 0.0
      %45 = vst.msk [vmem:[#allocation2 + $0x70] sm:$0xff] %vm30, 0.0
      %46 = vst.msk [vmem:[#allocation2 + $0x78] sm:$0xff] %vm30, 0.0
      %47 = vst.msk [vmem:[#allocation2 + $0x80] sm:$0xff] %vm30, 0.0
      %48 = vst.msk [vmem:[#allocation2 + $0x88] sm:$0xff] %vm30, 0.0
      %49 = vst.msk [vmem:[#allocation2 + $0x90] sm:$0xff] %vm30, 0.0
      %50 = vst.msk [vmem:[#allocation2 + $0x98] sm:$0xff] %vm30, 0.0
      %51 = vst.msk [vmem:[#allocation2 + $0xa0] sm:$0xff] %vm30, 0.0
      %52 = vst.msk [vmem:[#allocation2 + $0xa8] sm:$0xff] %vm30, 0.0
      %53 = vst.msk [vmem:[#allocation2 + $0xb0] sm:$0xff] %vm30, 0.0
      %54 = vst.msk [vmem:[#allocation2 + $0xb8] sm:$0xff] %vm30, 0.0
      %55 = vst.msk [vmem:[#allocation2 + $0xc0] sm:$0xff] %vm30, 0.0
      %56 = vst.msk [vmem:[#allocation2 + $0xc8] sm:$0xff] %vm30, 0.0
      %57 = vst.msk [vmem:[#allocation2 + $0xd0] sm:$0xff] %vm30, 0.0
      %58 = vst.msk [vmem:[#allocation2 + $0xd8] sm:$0xff] %vm30, 0.0
      %59 = vst.msk [vmem:[#allocation2 + $0xe0] sm:$0xff] %vm30, 0.0
      %60 = vst.msk [vmem:[#allocation2 + $0xe8] sm:$0xff] %vm30, 0.0
      %61 = vst.msk [vmem:[#allocation2 + $0xf0] sm:$0xff] %vm30, 0.0
      %62 = vst.msk [vmem:[#allocation2 + $0xf8] sm:$0xff] %vm30, 0.0
      %63 = vst.msk [vmem:[#allocation2 + $0x100] sm:$0xff] %vm30, 0.0
      %64 = vst.msk [vmem:[#allocation2 + $0x108] sm:$0xff] %vm30, 0.0
      %65 = vst.msk [vmem:[#allocation2 + $0x110] sm:$0xff] %vm30, 0.0
      %66 = vst.msk [vmem:[#allocation2 + $0x118] sm:$0xff] %vm30, 0.0
      %67 = vst.msk [vmem:[#allocation2 + $0x120] sm:$0xff] %vm30, 0.0
      %68 = vst.msk [vmem:[#allocation2 + $0x128] sm:$0xff] %vm30, 0.0
      %69 = vst.msk [vmem:[#allocation2 + $0x130] sm:$0xff] %vm30, 0.0
      %70 = vst.msk [vmem:[#allocation2 + $0x138] sm:$0xff] %vm30, 0.0
      %71 = vst.msk [vmem:[#allocation2 + $0x140] sm:$0xff] %vm30, 0.0
      %72 = vst.msk [vmem:[#allocation2 + $0x148] sm:$0xff] %vm30, 0.0
      %73 = vst.msk [vmem:[#allocation2 + $0x150] sm:$0xff] %vm30, 0.0
      %74 = vst.msk [vmem:[#allocation2 + $0x158] sm:$0xff] %vm30, 0.0
      %75 = vst.msk [vmem:[#allocation2 + $0x160] sm:$0xff] %vm30, 0.0
      %76 = vst.msk [vmem:[#allocation2 + $0x168] sm:$0xff] %vm30, 0.0
      %77 = vst.msk [vmem:[#allocation2 + $0x170] sm:$0xff] %vm30, 0.0
      %78 = vst.msk [vmem:[#allocation2 + $0x178] sm:$0xff] %vm30, 0.0
      %79 = vst.msk [vmem:[#allocation2 + $0x180] sm:$0xff] %vm30, 0.0
      %80 = vst.msk [vmem:[#allocation2 + $0x188] sm:$0xff] %vm30, 0.0
      %81 = vst.msk [vmem:[#allocation2 + $0x190] sm:$0xff] %vm30, 0.0
      %82 = vst.msk [vmem:[#allocation2 + $0x198] sm:$0xff] %vm30, 0.0
      %83 = vst.msk [vmem:[#allocation2 + $0x1a0] sm:$0xff] %vm30, 0.0
      %84 = vst.msk [vmem:[#allocation2 + $0x1a8] sm:$0xff] %vm30, 0.0
      %85 = vst.msk [vmem:[#allocation2 + $0x1b0] sm:$0xff] %vm30, 0.0
      %86 = vst.msk [vmem:[#allocation2 + $0x1b8] sm:$0xff] %vm30, 0.0
      %87 = vst.msk [vmem:[#allocation2 + $0x1c0] sm:$0xff] %vm30, 0.0
      %88 = vst.msk [vmem:[#allocation2 + $0x1c8] sm:$0xff] %vm30, 0.0
      %89 = vst.msk [vmem:[#allocation2 + $0x1d0] sm:$0xff] %vm30, 0.0
      %90 = vst.msk [vmem:[#allocation2 + $0x1d8] sm:$0xff] %vm30, 0.0
      %91 = vst.msk [vmem:[#allocation2 + $0x1e0] sm:$0xff] %vm30, 0.0
      %92 = vst.msk [vmem:[#allocation2 + $0x1e8] sm:$0xff] %vm30, 0.0
      %93 = vst.msk [vmem:[#allocation2 + $0x1f0] sm:$0xff] %vm30, 0.0
      %94 = vst.msk [vmem:[#allocation2 + $0x1f8] sm:$0xff] %vm30, 0.0
    $region17: #{tpu_custom_call.1} parent=1 // pred_fallthru
      _
    %v95 = vld [vmem:[#allocation2] sm:$0xff]
    %v96 = vld [vmem:[#allocation2 + $0x8] sm:$0xff]
    %v97 = vld [vmem:[#allocation2 + $0x10] sm:$0xff]
    %v98 = vld [vmem:[#allocation2 + $0x18] sm:$0xff]
    %v99 = vld [vmem:[#allocation2 + $0x20] sm:$0xff]
    %v100 = vld [vmem:[#allocation2 + $0x28] sm:$0xff]
    %v101 = vld [vmem:[#allocation2 + $0x30] sm:$0xff]
    %v102 = vld [vmem:[#allocation2 + $0x38] sm:$0xff]
    %v103 = vld [vmem:[#allocation2 + $0x40] sm:$0xff]
    %v104 = vld [vmem:[#allocation2 + $0x48] sm:$0xff]
    %v105 = vld [vmem:[#allocation2 + $0x50] sm:$0xff]
    %v106 = vld [vmem:[#allocation2 + $0x58] sm:$0xff]
    %v107 = vld [vmem:[#allocation2 + $0x60] sm:$0xff]
    %v108 = vld [vmem:[#allocation2 + $0x68] sm:$0xff]
    %v109 = vld [vmem:[#allocation2 + $0x70] sm:$0xff]
    %v110 = vld [vmem:[#allocation2 + $0x78] sm:$0xff]
    %v111 = vld [vmem:[#allocation2 + $0x80] sm:$0xff]
    %v112 = vld [vmem:[#allocation2 + $0x88] sm:$0xff]
    %v113 = vld [vmem:[#allocation2 + $0x90] sm:$0xff]
    %v114 = vld [vmem:[#allocation2 + $0x98] sm:$0xff]
    %v115 = vld [vmem:[#allocation2 + $0xa0] sm:$0xff]
    %v116 = vld [vmem:[#allocation2 + $0xa8] sm:$0xff]
    %v117 = vld [vmem:[#allocation2 + $0xb0] sm:$0xff]
    %v118 = vld [vmem:[#allocation2 + $0xb8] sm:$0xff]
    %v119 = vld [vmem:[#allocation2 + $0xc0] sm:$0xff]
    %v120 = vld [vmem:[#allocation2 + $0xc8] sm:$0xff]
    %v121 = vld [vmem:[#allocation2 + $0xd0] sm:$0xff]
    %v122 = vld [vmem:[#allocation2 + $0xd8] sm:$0xff]
    %v123 = vld [vmem:[#allocation2 + $0xe0] sm:$0xff]
    %v124 = vld [vmem:[#allocation2 + $0xe8] sm:$0xff]
    %v125 = vld [vmem:[#allocation2 + $0xf0] sm:$0xff]
    %v126 = vld [vmem:[#allocation2 + $0xf8] sm:$0xff]
    %v127 = vld [vmem:[#allocation2 + $0x100] sm:$0xff]
    %v128 = vld [vmem:[#allocation2 + $0x108] sm:$0xff]
    %v129 = vld [vmem:[#allocation2 + $0x110] sm:$0xff]
    %v130 = vld [vmem:[#allocation2 + $0x118] sm:$0xff]
    %v131 = vld [vmem:[#allocation2 + $0x120] sm:$0xff]
    %v132 = vld [vmem:[#allocation2 + $0x128] sm:$0xff]
    %v133 = vld [vmem:[#allocation2 + $0x130] sm:$0xff]
    %v134 = vld [vmem:[#allocation2 + $0x138] sm:$0xff]
    %v135 = vld [vmem:[#allocation2 + $0x140] sm:$0xff]
    %v136 = vld [vmem:[#allocation2 + $0x148] sm:$0xff]
    %v137 = vld [vmem:[#allocation2 + $0x150] sm:$0xff]
    %v138 = vld [vmem:[#allocation2 + $0x158] sm:$0xff]
    %v139 = vld [vmem:[#allocation2 + $0x160] sm:$0xff]
    %v140 = vld [vmem:[#allocation2 + $0x168] sm:$0xff]
    %v141 = vld [vmem:[#allocation2 + $0x170] sm:$0xff]
    %v142 = vld [vmem:[#allocation2 + $0x178] sm:$0xff]
    %v143 = vld [vmem:[#allocation2 + $0x180] sm:$0xff]
    %v144 = vld [vmem:[#allocation2 + $0x188] sm:$0xff]
    %v145 = vld [vmem:[#allocation2 + $0x190] sm:$0xff]
    %v146 = vld [vmem:[#allocation2 + $0x198] sm:$0xff]
    %v147 = vld [vmem:[#allocation2 + $0x1a0] sm:$0xff]
    %v148 = vld [vmem:[#allocation2 + $0x1a8] sm:$0xff]
    %v149 = vld [vmem:[#allocation2 + $0x1b0] sm:$0xff]
    %v150 = vld [vmem:[#allocation2 + $0x1b8] sm:$0xff]
    %v151 = vld [vmem:[#allocation2 + $0x1c0] sm:$0xff]
    %v152 = vld [vmem:[#allocation2 + $0x1c8] sm:$0xff]
    %v153 = vld [vmem:[#allocation2 + $0x1d0] sm:$0xff]
    %v154 = vld [vmem:[#allocation2 + $0x1d8] sm:$0xff]
    %v155 = vld [vmem:[#allocation2 + $0x1e0] sm:$0xff]
    %v156 = vld [vmem:[#allocation2 + $0x1e8] sm:$0xff]
    %v157 = vld [vmem:[#allocation2 + $0x1f0] sm:$0xff]
    %v158 = vld [vmem:[#allocation2 + $0x1f8] sm:$0xff]
    %v159 = vld [vmem:[#allocation3] sm:$0xff]
    %v160 = vld [vmem:[#allocation3 + $0x8] sm:$0xff]
    %v161 = vld [vmem:[#allocation3 + $0x10] sm:$0xff]
    %v162 = vld [vmem:[#allocation3 + $0x18] sm:$0xff]
    %v163 = vld [vmem:[#allocation3 + $0x20] sm:$0xff]
    %v164 = vld [vmem:[#allocation3 + $0x28] sm:$0xff]
    %v165 = vld [vmem:[#allocation3 + $0x30] sm:$0xff]
    %v166 = vld [vmem:[#allocation3 + $0x38] sm:$0xff]
    %v167 = vld [vmem:[#allocation3 + $0x40] sm:$0xff]
    %v168 = vld [vmem:[#allocation3 + $0x48] sm:$0xff]
    %v169 = vld [vmem:[#allocation3 + $0x50] sm:$0xff]
    %v170 = vld [vmem:[#allocation3 + $0x58] sm:$0xff]
    %v171 = vld [vmem:[#allocation3 + $0x60] sm:$0xff]
    %v172 = vld [vmem:[#allocation3 + $0x68] sm:$0xff]
    %v173 = vld [vmem:[#allocation3 + $0x70] sm:$0xff]
    %v174 = vld [vmem:[#allocation3 + $0x78] sm:$0xff]
    %v175 = vld [vmem:[#allocation3 + $0x80] sm:$0xff]
    %v176 = vld [vmem:[#allocation3 + $0x88] sm:$0xff]
    %v177 = vld [vmem:[#allocation3 + $0x90] sm:$0xff]
    %v178 = vld [vmem:[#allocation3 + $0x98] sm:$0xff]
    %v179 = vld [vmem:[#allocation3 + $0xa0] sm:$0xff]
    %v180 = vld [vmem:[#allocation3 + $0xa8] sm:$0xff]
    %v181 = vld [vmem:[#allocation3 + $0xb0] sm:$0xff]
    %v182 = vld [vmem:[#allocation3 + $0xb8] sm:$0xff]
    %v183 = vld [vmem:[#allocation3 + $0xc0] sm:$0xff]
    %v184 = vld [vmem:[#allocation3 + $0xc8] sm:$0xff]
    %v185 = vld [vmem:[#allocation3 + $0xd0] sm:$0xff]
    %v186 = vld [vmem:[#allocation3 + $0xd8] sm:$0xff]
    %v187 = vld [vmem:[#allocation3 + $0xe0] sm:$0xff]
    %v188 = vld [vmem:[#allocation3 + $0xe8] sm:$0xff]
    %v189 = vld [vmem:[#allocation3 + $0xf0] sm:$0xff]
    %v190 = vld [vmem:[#allocation3 + $0xf8] sm:$0xff]
    %v191 = vld [vmem:[#allocation3 + $0x100] sm:$0xff]
    %v192 = vld [vmem:[#allocation3 + $0x108] sm:$0xff]
    %v193 = vld [vmem:[#allocation3 + $0x110] sm:$0xff]
    %v194 = vld [vmem:[#allocation3 + $0x118] sm:$0xff]
    %v195 = vld [vmem:[#allocation3 + $0x120] sm:$0xff]
    %v196 = vld [vmem:[#allocation3 + $0x128] sm:$0xff]
    %v197 = vld [vmem:[#allocation3 + $0x130] sm:$0xff]
    %v198 = vld [vmem:[#allocation3 + $0x138] sm:$0xff]
    %v199 = vld [vmem:[#allocation3 + $0x140] sm:$0xff]
    %v200 = vld [vmem:[#allocation3 + $0x148] sm:$0xff]
    %v201 = vld [vmem:[#allocation3 + $0x150] sm:$0xff]
    %v202 = vld [vmem:[#allocation3 + $0x158] sm:$0xff]
    %v203 = vld [vmem:[#allocation3 + $0x160] sm:$0xff]
    %v204 = vld [vmem:[#allocation3 + $0x168] sm:$0xff]
    %v205 = vld [vmem:[#allocation3 + $0x170] sm:$0xff]
    %v206 = vld [vmem:[#allocation3 + $0x178] sm:$0xff]
    %v207 = vld [vmem:[#allocation3 + $0x180] sm:$0xff]
    %v208 = vld [vmem:[#allocation3 + $0x188] sm:$0xff]
    %v209 = vld [vmem:[#allocation3 + $0x190] sm:$0xff]
    %v210 = vld [vmem:[#allocation3 + $0x198] sm:$0xff]
    %v211 = vld [vmem:[#allocation3 + $0x1a0] sm:$0xff]
    %v212 = vld [vmem:[#allocation3 + $0x1a8] sm:$0xff]
    %v213 = vld [vmem:[#allocation3 + $0x1b0] sm:$0xff]
    %v214 = vld [vmem:[#allocation3 + $0x1b8] sm:$0xff]
    %v215 = vld [vmem:[#allocation3 + $0x1c0] sm:$0xff]
    %v216 = vld [vmem:[#allocation3 + $0x1c8] sm:$0xff]
    %v217 = vld [vmem:[#allocation3 + $0x1d0] sm:$0xff]
    %v218 = vld [vmem:[#allocation3 + $0x1d8] sm:$0xff]
    %v219 = vld [vmem:[#allocation3 + $0x1e0] sm:$0xff]
    %v220 = vld [vmem:[#allocation3 + $0x1e8] sm:$0xff]
    %v221 = vld [vmem:[#allocation3 + $0x1f0] sm:$0xff]
    %v222 = vld [vmem:[#allocation3 + $0x1f8] sm:$0xff]
    %v223 = vld [vmem:[%s1] sm:$0xf]
    %v224 = vld [vmem:[%s1 + $0x4] sm:$0xf]
    %v225 = vld [vmem:[%s1 + $0x8] sm:$0xf]
    %v226 = vld [vmem:[%s1 + $0xc] sm:$0xf]
    %v227 = vld [vmem:[%s1 + $0x10] sm:$0xf]
    %v228 = vld [vmem:[%s1 + $0x14] sm:$0xf]
    %v229 = vld [vmem:[%s1 + $0x18] sm:$0xf]
    %v230 = vld [vmem:[%s1 + $0x1c] sm:$0xf]
    %v231 = vld [vmem:[%s1 + $0x20] sm:$0xf]
    %v232 = vld [vmem:[%s1 + $0x24] sm:$0xf]
    %v233 = vld [vmem:[%s1 + $0x28] sm:$0xf]
    %v234 = vld [vmem:[%s1 + $0x2c] sm:$0xf]
    %v235 = vld [vmem:[%s1 + $0x30] sm:$0xf]
    %v236 = vld [vmem:[%s1 + $0x34] sm:$0xf]
    %v237 = vld [vmem:[%s1 + $0x38] sm:$0xf]
    %v238 = vld [vmem:[%s1 + $0x3c] sm:$0xf]
    %v239 = vld [vmem:[%s1 + $0x40] sm:$0xf]
    %v240 = vld [vmem:[%s1 + $0x44] sm:$0xf]
    %v241 = vld [vmem:[%s1 + $0x48] sm:$0xf]
    %v242 = vld [vmem:[%s1 + $0x4c] sm:$0xf]
    %v243 = vld [vmem:[%s1 + $0x50] sm:$0xf]
    %v244 = vld [vmem:[%s1 + $0x54] sm:$0xf]
    %v245 = vld [vmem:[%s1 + $0x58] sm:$0xf]
    %v246 = vld [vmem:[%s1 + $0x5c] sm:$0xf]
    %v247 = vld [vmem:[%s1 + $0x60] sm:$0xf]
    %v248 = vld [vmem:[%s1 + $0x64] sm:$0xf]
    %v249 = vld [vmem:[%s1 + $0x68] sm:$0xf]
    %v250 = vld [vmem:[%s1 + $0x6c] sm:$0xf]
    %v251 = vld [vmem:[%s1 + $0x70] sm:$0xf]
    %v252 = vld [vmem:[%s1 + $0x74] sm:$0xf]
    %v253 = vld [vmem:[%s1 + $0x78] sm:$0xf]
    %v254 = vld [vmem:[%s1 + $0x7c] sm:$0xf]
    %v319 = vunpack.c.l.b16 %v159
    %v320 = vunpack.c.h.b16 %v159
    %v321 = vunpack.c.l.b16 %v160
    %v322 = vunpack.c.h.b16 %v160
    %v323 = vunpack.c.l.b16 %v161
    %v324 = vunpack.c.h.b16 %v161
    %v325 = vunpack.c.l.b16 %v162
    %v326 = vunpack.c.h.b16 %v162
    %v327 = vunpack.c.l.b16 %v163
    %v328 = vunpack.c.h.b16 %v163
    %v329 = vunpack.c.l.b16 %v164
    %v330 = vunpack.c.h.b16 %v164
    %v331 = vunpack.c.l.b16 %v165
    %v332 = vunpack.c.h.b16 %v165
    %v333 = vunpack.c.l.b16 %v166
    %v334 = vunpack.c.h.b16 %v166
    %v335 = vunpack.c.l.b16 %v167
    %v336 = vunpack.c.h.b16 %v167
    %v337 = vunpack.c.l.b16 %v168
    %v338 = vunpack.c.h.b16 %v168
    %v339 = vunpack.c.l.b16 %v169
    %v340 = vunpack.c.h.b16 %v169
    %v341 = vunpack.c.l.b16 %v170
    %v342 = vunpack.c.h.b16 %v170
    %v343 = vunpack.c.l.b16 %v171
    %v344 = vunpack.c.h.b16 %v171
    %v345 = vunpack.c.l.b16 %v172
    %v346 = vunpack.c.h.b16 %v172
    %v347 = vunpack.c.l.b16 %v173
    %v348 = vunpack.c.h.b16 %v173
    %v349 = vunpack.c.l.b16 %v174
    %v350 = vunpack.c.h.b16 %v174
    %v351 = vunpack.c.l.b16 %v175
    %v352 = vunpack.c.h.b16 %v175
    %v353 = vunpack.c.l.b16 %v176
    %v354 = vunpack.c.h.b16 %v176
    %v355 = vunpack.c.l.b16 %v177
    %v356 = vunpack.c.h.b16 %v177
    %v357 = vunpack.c.l.b16 %v178
    %v358 = vunpack.c.h.b16 %v178
    %v359 = vunpack.c.l.b16 %v179
    %v360 = vunpack.c.h.b16 %v179
    %v361 = vunpack.c.l.b16 %v180
    %v362 = vunpack.c.h.b16 %v180
    %v363 = vunpack.c.l.b16 %v181
    %v364 = vunpack.c.h.b16 %v181
    %v365 = vunpack.c.l.b16 %v182
    %v366 = vunpack.c.h.b16 %v182
    %v367 = vunpack.c.l.b16 %v183
    %v368 = vunpack.c.h.b16 %v183
    %v369 = vunpack.c.l.b16 %v184
    %v370 = vunpack.c.h.b16 %v184
    %v371 = vunpack.c.l.b16 %v185
    %v372 = vunpack.c.h.b16 %v185
    %v373 = vunpack.c.l.b16 %v186
    %v374 = vunpack.c.h.b16 %v186
    %v375 = vunpack.c.l.b16 %v187
    %v376 = vunpack.c.h.b16 %v187
    %v377 = vunpack.c.l.b16 %v188
    %v378 = vunpack.c.h.b16 %v188
    %v379 = vunpack.c.l.b16 %v189
    %v380 = vunpack.c.h.b16 %v189
    %v381 = vunpack.c.l.b16 %v190
    %v382 = vunpack.c.h.b16 %v190
    %v383 = vunpack.c.l.b16 %v191
    %v384 = vunpack.c.h.b16 %v191
    %v385 = vunpack.c.l.b16 %v192
    %v386 = vunpack.c.h.b16 %v192
    %v387 = vunpack.c.l.b16 %v193
    %v388 = vunpack.c.h.b16 %v193
    %v389 = vunpack.c.l.b16 %v194
    %v390 = vunpack.c.h.b16 %v194
    %v391 = vunpack.c.l.b16 %v195
    %v392 = vunpack.c.h.b16 %v195
    %v393 = vunpack.c.l.b16 %v196
    %v394 = vunpack.c.h.b16 %v196
    %v395 = vunpack.c.l.b16 %v197
    %v396 = vunpack.c.h.b16 %v197
    %v397 = vunpack.c.l.b16 %v198
    %v398 = vunpack.c.h.b16 %v198
    %v399 = vunpack.c.l.b16 %v199
    %v400 = vunpack.c.h.b16 %v199
    %v401 = vunpack.c.l.b16 %v200
    %v402 = vunpack.c.h.b16 %v200
    %v403 = vunpack.c.l.b16 %v201
    %v404 = vunpack.c.h.b16 %v201
    %v405 = vunpack.c.l.b16 %v202
    %v406 = vunpack.c.h.b16 %v202
    %v407 = vunpack.c.l.b16 %v203
    %v408 = vunpack.c.h.b16 %v203
    %v409 = vunpack.c.l.b16 %v204
    %v410 = vunpack.c.h.b16 %v204
    %v411 = vunpack.c.l.b16 %v205
    %v412 = vunpack.c.h.b16 %v205
    %v413 = vunpack.c.l.b16 %v206
    %v414 = vunpack.c.h.b16 %v206
    %v415 = vunpack.c.l.b16 %v207
    %v416 = vunpack.c.h.b16 %v207
    %v417 = vunpack.c.l.b16 %v208
    %v418 = vunpack.c.h.b16 %v208
    %v419 = vunpack.c.l.b16 %v209
    %v420 = vunpack.c.h.b16 %v209
    %v421 = vunpack.c.l.b16 %v210
    %v422 = vunpack.c.h.b16 %v210
    %v423 = vunpack.c.l.b16 %v211
    %v424 = vunpack.c.h.b16 %v211
    %v425 = vunpack.c.l.b16 %v212
    %v426 = vunpack.c.h.b16 %v212
    %v427 = vunpack.c.l.b16 %v213
    %v428 = vunpack.c.h.b16 %v213
    %v429 = vunpack.c.l.b16 %v214
    %v430 = vunpack.c.h.b16 %v214
    %v431 = vunpack.c.l.b16 %v215
    %v432 = vunpack.c.h.b16 %v215
    %v433 = vunpack.c.l.b16 %v216
    %v434 = vunpack.c.h.b16 %v216
    %v435 = vunpack.c.l.b16 %v217
    %v436 = vunpack.c.h.b16 %v217
    %v437 = vunpack.c.l.b16 %v218
    %v438 = vunpack.c.h.b16 %v218
    %v439 = vunpack.c.l.b16 %v219
    %v440 = vunpack.c.h.b16 %v219
    %v441 = vunpack.c.l.b16 %v220
    %v442 = vunpack.c.h.b16 %v220
    %v443 = vunpack.c.l.b16 %v221
    %v444 = vunpack.c.h.b16 %v221
    %v445 = vunpack.c.l.b16 %v222
    %v446 = vunpack.c.h.b16 %v222
    %v447 = vpack.c.b16 %v321, %v319
    %v448 = vpack.c.b16 %v322, %v320
    %v449 = vpack.c.b16 %v325, %v323
    %v450 = vpack.c.b16 %v326, %v324
    %v451 = vpack.c.b16 %v329, %v327
    %v452 = vpack.c.b16 %v330, %v328
    %v453 = vpack.c.b16 %v333, %v331
    %v454 = vpack.c.b16 %v334, %v332
    %v455 = vpack.c.b16 %v337, %v335
    %v456 = vpack.c.b16 %v338, %v336
    %v457 = vpack.c.b16 %v341, %v339
    %v458 = vpack.c.b16 %v342, %v340
    %v459 = vpack.c.b16 %v345, %v343
    %v460 = vpack.c.b16 %v346, %v344
    %v461 = vpack.c.b16 %v349, %v347
    %v462 = vpack.c.b16 %v350, %v348
    %v463 = vpack.c.b16 %v353, %v351
    %v464 = vpack.c.b16 %v354, %v352
    %v465 = vpack.c.b16 %v357, %v355
    %v466 = vpack.c.b16 %v358, %v356
    %v467 = vpack.c.b16 %v361, %v359
    %v468 = vpack.c.b16 %v362, %v360
    %v469 = vpack.c.b16 %v365, %v363
    %v470 = vpack.c.b16 %v366, %v364
    %v471 = vpack.c.b16 %v369, %v367
    %v472 = vpack.c.b16 %v370, %v368
    %v473 = vpack.c.b16 %v373, %v371
    %v474 = vpack.c.b16 %v374, %v372
    %v475 = vpack.c.b16 %v377, %v375
    %v476 = vpack.c.b16 %v378, %v376
    %v477 = vpack.c.b16 %v381, %v379
    %v478 = vpack.c.b16 %v382, %v380
    %v479 = vpack.c.b16 %v385, %v383
    %v480 = vpack.c.b16 %v386, %v384
    %v481 = vpack.c.b16 %v389, %v387
    %v482 = vpack.c.b16 %v390, %v388
    %v483 = vpack.c.b16 %v393, %v391
    %v484 = vpack.c.b16 %v394, %v392
    %v485 = vpack.c.b16 %v397, %v395
    %v486 = vpack.c.b16 %v398, %v396
    %v487 = vpack.c.b16 %v401, %v399
    %v488 = vpack.c.b16 %v402, %v400
    %v489 = vpack.c.b16 %v405, %v403
    %v490 = vpack.c.b16 %v406, %v404
    %v491 = vpack.c.b16 %v409, %v407
    %v492 = vpack.c.b16 %v410, %v408
    %v493 = vpack.c.b16 %v413, %v411
    %v494 = vpack.c.b16 %v414, %v412
    %v495 = vpack.c.b16 %v417, %v415
    %v496 = vpack.c.b16 %v418, %v416
    %v497 = vpack.c.b16 %v421, %v419
    %v498 = vpack.c.b16 %v422, %v420
    %v499 = vpack.c.b16 %v425, %v423
    %v500 = vpack.c.b16 %v426, %v424
    %v501 = vpack.c.b16 %v429, %v427
    %v502 = vpack.c.b16 %v430, %v428
    %v503 = vpack.c.b16 %v433, %v431
    %v504 = vpack.c.b16 %v434, %v432
    %v505 = vpack.c.b16 %v437, %v435
    %v506 = vpack.c.b16 %v438, %v436
    %v507 = vpack.c.b16 %v441, %v439
    %v508 = vpack.c.b16 %v442, %v440
    %v509 = vpack.c.b16 %v445, %v443
    %v510 = vpack.c.b16 %v446, %v444
    %v607 = vunpack.c.l.b16 %v223
    %v608 = vunpack.c.l.b16 %v224
    %v609 = vunpack.c.l.b16 %v225
    %v610 = vunpack.c.l.b16 %v226
    %v611 = vunpack.c.l.b16 %v227
    %v612 = vunpack.c.l.b16 %v228
    %v613 = vunpack.c.l.b16 %v229
    %v614 = vunpack.c.l.b16 %v230
    %v615 = vunpack.c.l.b16 %v231
    %v616 = vunpack.c.l.b16 %v232
    %v617 = vunpack.c.l.b16 %v233
    %v618 = vunpack.c.l.b16 %v234
    %v619 = vunpack.c.l.b16 %v235
    %v620 = vunpack.c.l.b16 %v236
    %v621 = vunpack.c.l.b16 %v237
    %v622 = vunpack.c.l.b16 %v238
    %v623 = vunpack.c.l.b16 %v239
    %v624 = vunpack.c.l.b16 %v240
    %v625 = vunpack.c.l.b16 %v241
    %v626 = vunpack.c.l.b16 %v242
    %v627 = vunpack.c.l.b16 %v243
    %v628 = vunpack.c.l.b16 %v244
    %v629 = vunpack.c.l.b16 %v245
    %v630 = vunpack.c.l.b16 %v246
    %v631 = vunpack.c.l.b16 %v247
    %v632 = vunpack.c.l.b16 %v248
    %v633 = vunpack.c.l.b16 %v249
    %v634 = vunpack.c.l.b16 %v250
    %v635 = vunpack.c.l.b16 %v251
    %v636 = vunpack.c.l.b16 %v252
    %v637 = vunpack.c.l.b16 %v253
    %v638 = vunpack.c.l.b16 %v254
    %v639 = vpack.c.b16 %v608, %v607
    %v640 = vpack.c.b16 %v610, %v609
    %v641 = vpack.c.b16 %v612, %v611
    %v642 = vpack.c.b16 %v614, %v613
    %v643 = vpack.c.b16 %v616, %v615
    %v644 = vpack.c.b16 %v618, %v617
    %v645 = vpack.c.b16 %v620, %v619
    %v646 = vpack.c.b16 %v622, %v621
    %v647 = vpack.c.b16 %v624, %v623
    %v648 = vpack.c.b16 %v626, %v625
    %v649 = vpack.c.b16 %v628, %v627
    %v650 = vpack.c.b16 %v630, %v629
    %v651 = vpack.c.b16 %v632, %v631
    %v652 = vpack.c.b16 %v634, %v633
    %v653 = vpack.c.b16 %v636, %v635
    %v654 = vpack.c.b16 %v638, %v637
    %671 = vmatprep.subr.bf16.mxu0 0
    %672 = vmatpush1.bf16.msra.mxu0 %v639
    %673 = vmatprep.subr.bf16.mxu0 0
    %674 = vmatpush1.bf16.msra.mxu0 %v640
    %675 = vmatprep.subr.bf16.mxu0 0
    %676 = vmatpush1.bf16.msra.mxu0 %v641
    %677 = vmatprep.subr.bf16.mxu0 0
    %678 = vmatpush1.bf16.msra.mxu0 %v642
    %679 = vmatprep.subr.bf16.mxu0 0
    %680 = vmatpush1.bf16.msra.mxu0 %v643
    %681 = vmatprep.subr.bf16.mxu0 0
    %682 = vmatpush1.bf16.msra.mxu0 %v644
    %683 = vmatprep.subr.bf16.mxu0 0
    %684 = vmatpush1.bf16.msra.mxu0 %v645
    %685 = vmatprep.subr.bf16.mxu0 0
    %686 = vmatpush1.bf16.msra.mxu0 %v646
    %687 = vmatprep.subr.bf16.mxu0 0
    %688 = vmatpush1.bf16.msra.mxu0 %v647
    %689 = vmatprep.subr.bf16.mxu0 0
    %690 = vmatpush1.bf16.msra.mxu0 %v648
    %691 = vmatprep.subr.bf16.mxu0 0
    %692 = vmatpush1.bf16.msra.mxu0 %v649
    %693 = vmatprep.subr.bf16.mxu0 0
    %694 = vmatpush1.bf16.msra.mxu0 %v650
    %695 = vmatprep.subr.bf16.mxu0 0
    %696 = vmatpush1.bf16.msra.mxu0 %v651
    %697 = vmatprep.subr.bf16.mxu0 0
    %698 = vmatpush1.bf16.msra.mxu0 %v652
    %699 = vmatprep.subr.bf16.mxu0 0
    %700 = vmatpush1.bf16.msra.mxu0 %v653
    %701 = vmatprep.subr.bf16.mxu0 0
    %702 = vmatpush1.bf16.msra.mxu0 %v654
    %703 = vmatprep.mubr.bf16.mxu0 %v448
    %704 = vmatmul.mubr.bf16.gmra.mrb[0].mxu0 %v447
    %v705 = vpop.f32.mrb[0].mxu0
    %v706 = vadd.f32 0.0, %v705
    %v707 = vpop.f32.mrb[0].mxu0
    %v708 = vpop.f32.mrb[0].mxu0
    %v709 = vadd.f32 0.0, %v708
    %v710 = vpop.f32.mrb[0].mxu0
    %711 = vmatprep.mubr.bf16.mxu0 %v450
    %712 = vmatmul.mubr.bf16.gmra.mrb[0].mxu0 %v449
    %v713 = vpop.f32.mrb[0].mxu0
    %v714 = vadd.f32 0.0, %v713
    %v715 = vpop.f32.mrb[0].mxu0
    %v716 = vpop.f32.mrb[0].mxu0
    %v717 = vadd.f32 0.0, %v716
    %v718 = vpop.f32.mrb[0].mxu0
    %719 = vmatprep.mubr.bf16.mxu0 %v452
    %720 = vmatmul.mubr.bf16.gmra.mrb[0].mxu0 %v451
    %v721 = vpop.f32.mrb[0].mxu0
    %v722 = vadd.f32 0.0, %v721
    %v723 = vpop.f32.mrb[0].mxu0
    %v724 = vpop.f32.mrb[0].mxu0
    %v725 = vadd.f32 0.0, %v724
    %v726 = vpop.f32.mrb[0].mxu0
    %727 = vmatprep.mubr.bf16.mxu0 %v454
    %728 = vmatmul.mubr.bf16.gmra.mrb[0].mxu0 %v453
    %v729 = vpop.f32.mrb[0].mxu0
    %v730 = vadd.f32 0.0, %v729
    %v731 = vpop.f32.mrb[0].mxu0
    %v732 = vpop.f32.mrb[0].mxu0
    %v733 = vadd.f32 0.0, %v732
    %v734 = vpop.f32.mrb[0].mxu0
    %735 = vmatprep.mubr.bf16.mxu0 %v456
    %736 = vmatmul.mubr.bf16.gmra.mrb[0].mxu0 %v455
    %v737 = vpop.f32.mrb[0].mxu0
    %v738 = vadd.f32 0.0, %v737
    %v739 = vpop.f32.mrb[0].mxu0
    %v740 = vpop.f32.mrb[0].mxu0
    %v741 = vadd.f32 0.0, %v740
    %v742 = vpop.f32.mrb[0].mxu0
    %743 = vmatprep.mubr.bf16.mxu0 %v458
    %744 = vmatmul.mubr.bf16.gmra.mrb[0].mxu0 %v457
    %v745 = vpop.f32.mrb[0].mxu0
    %v746 = vadd.f32 0.0, %v745
    %v747 = vpop.f32.mrb[0].mxu0
    %v748 = vpop.f32.mrb[0].mxu0
    %v749 = vadd.f32 0.0, %v748
    %v750 = vpop.f32.mrb[0].mxu0
    %751 = vmatprep.mubr.bf16.mxu0 %v460
    %752 = vmatmul.mubr.bf16.gmra.mrb[0].mxu0 %v459
    %v753 = vpop.f32.mrb[0].mxu0
    %v754 = vadd.f32 0.0, %v753
    %v755 = vpop.f32.mrb[0].mxu0
    %v756 = vpop.f32.mrb[0].mxu0
    %v757 = vadd.f32 0.0, %v756
    %v758 = vpop.f32.mrb[0].mxu0
    %759 = vmatprep.mubr.bf16.mxu0 %v462
    %760 = vmatmul.mubr.bf16.gmra.mrb[0].mxu0 %v461
    %v761 = vpop.f32.mrb[0].mxu0
    %v762 = vadd.f32 0.0, %v761
    %v763 = vpop.f32.mrb[0].mxu0
    %v764 = vpop.f32.mrb[0].mxu0
    %v765 = vadd.f32 0.0, %v764
    %v766 = vpop.f32.mrb[0].mxu0
    %767 = vmatprep.mubr.bf16.mxu0 %v464
    %768 = vmatmul.mubr.bf16.gmra.mrb[0].mxu0 %v463
    %v769 = vpop.f32.mrb[0].mxu0
    %v770 = vadd.f32 0.0, %v769
    %v771 = vpop.f32.mrb[0].mxu0
    %v772 = vpop.f32.mrb[0].mxu0
    %v773 = vadd.f32 0.0, %v772
    %v774 = vpop.f32.mrb[0].mxu0
    %775 = vmatprep.mubr.bf16.mxu0 %v466
    %776 = vmatmul.mubr.bf16.gmra.mrb[0].mxu0 %v465
    %v777 = vpop.f32.mrb[0].mxu0
    %v778 = vadd.f32 0.0, %v777
    %v779 = vpop.f32.mrb[0].mxu0
    %v780 = vpop.f32.mrb[0].mxu0
    %v781 = vadd.f32 0.0, %v780
    %v782 = vpop.f32.mrb[0].mxu0
    %783 = vmatprep.mubr.bf16.mxu0 %v468
    %784 = vmatmul.mubr.bf16.gmra.mrb[0].mxu0 %v467
    %v785 = vpop.f32.mrb[0].mxu0
    %v786 = vadd.f32 0.0, %v785
    %v787 = vpop.f32.mrb[0].mxu0
    %v788 = vpop.f32.mrb[0].mxu0
    %v789 = vadd.f32 0.0, %v788
    %v790 = vpop.f32.mrb[0].mxu0
    %791 = vmatprep.mubr.bf16.mxu0 %v470
    %792 = vmatmul.mubr.bf16.gmra.mrb[0].mxu0 %v469
    %v793 = vpop.f32.mrb[0].mxu0
    %v794 = vadd.f32 0.0, %v793
    %v795 = vpop.f32.mrb[0].mxu0
    %v796 = vpop.f32.mrb[0].mxu0
    %v797 = vadd.f32 0.0, %v796
    %v798 = vpop.f32.mrb[0].mxu0
    %799 = vmatprep.mubr.bf16.mxu0 %v472
    %800 = vmatmul.mubr.bf16.gmra.mrb[0].mxu0 %v471
    %v801 = vpop.f32.mrb[0].mxu0
    %v802 = vadd.f32 0.0, %v801
    %v803 = vpop.f32.mrb[0].mxu0
    %v804 = vpop.f32.mrb[0].mxu0
    %v805 = vadd.f32 0.0, %v804
    %v806 = vpop.f32.mrb[0].mxu0
    %807 = vmatprep.mubr.bf16.mxu0 %v474
    %808 = vmatmul.mubr.bf16.gmra.mrb[0].mxu0 %v473
    %v809 = vpop.f32.mrb[0].mxu0
    %v810 = vadd.f32 0.0, %v809
    %v811 = vpop.f32.mrb[0].mxu0
    %v812 = vpop.f32.mrb[0].mxu0
    %v813 = vadd.f32 0.0, %v812
    %v814 = vpop.f32.mrb[0].mxu0
    %815 = vmatprep.mubr.bf16.mxu0 %v476
    %816 = vmatmul.mubr.bf16.gmra.mrb[0].mxu0 %v475
    %v817 = vpop.f32.mrb[0].mxu0
    %v818 = vadd.f32 0.0, %v817
    %v819 = vpop.f32.mrb[0].mxu0
    %v820 = vpop.f32.mrb[0].mxu0
    %v821 = vadd.f32 0.0, %v820
    %v822 = vpop.f32.mrb[0].mxu0
    %823 = vmatprep.mubr.bf16.mxu0 %v478
    %824 = vmatmul.mubr.bf16.gmra.mrb[0].mxu0 %v477
    %v825 = vpop.f32.mrb[0].mxu0
    %v826 = vadd.f32 0.0, %v825
    %v827 = vpop.f32.mrb[0].mxu0
    %v828 = vpop.f32.mrb[0].mxu0
    %v829 = vadd.f32 0.0, %v828
    %v830 = vpop.f32.mrb[0].mxu0
    %831 = vmatprep.mubr.bf16.mxu0 %v480
    %832 = vmatmul.mubr.bf16.gmra.mrb[0].mxu0 %v479
    %v833 = vpop.f32.mrb[0].mxu0
    %v834 = vadd.f32 0.0, %v833
    %v835 = vpop.f32.mrb[0].mxu0
    %v836 = vpop.f32.mrb[0].mxu0
    %v837 = vadd.f32 0.0, %v836
    %v838 = vpop.f32.mrb[0].mxu0
    %839 = vmatprep.mubr.bf16.mxu0 %v482
    %840 = vmatmul.mubr.bf16.gmra.mrb[0].mxu0 %v481
    %v841 = vpop.f32.mrb[0].mxu0
    %v842 = vadd.f32 0.0, %v841
    %v843 = vpop.f32.mrb[0].mxu0
    %v844 = vpop.f32.mrb[0].mxu0
    %v845 = vadd.f32 0.0, %v844
    %v846 = vpop.f32.mrb[0].mxu0
    %847 = vmatprep.mubr.bf16.mxu0 %v484
    %848 = vmatmul.mubr.bf16.gmra.mrb[0].mxu0 %v483
    %v849 = vpop.f32.mrb[0].mxu0
    %v850 = vadd.f32 0.0, %v849
    %v851 = vpop.f32.mrb[0].mxu0
    %v852 = vpop.f32.mrb[0].mxu0
    %v853 = vadd.f32 0.0, %v852
    %v854 = vpop.f32.mrb[0].mxu0
    %855 = vmatprep.mubr.bf16.mxu0 %v486
    %856 = vmatmul.mubr.bf16.gmra.mrb[0].mxu0 %v485
    %v857 = vpop.f32.mrb[0].mxu0
    %v858 = vadd.f32 0.0, %v857
    %v859 = vpop.f32.mrb[0].mxu0
    %v860 = vpop.f32.mrb[0].mxu0
    %v861 = vadd.f32 0.0, %v860
    %v862 = vpop.f32.mrb[0].mxu0
    %863 = vmatprep.mubr.bf16.mxu0 %v488
    %864 = vmatmul.mubr.bf16.gmra.mrb[0].mxu0 %v487
    %v865 = vpop.f32.mrb[0].mxu0
    %v866 = vadd.f32 0.0, %v865
    %v867 = vpop.f32.mrb[0].mxu0
    %v868 = vpop.f32.mrb[0].mxu0
    %v869 = vadd.f32 0.0, %v868
    %v870 = vpop.f32.mrb[0].mxu0
    %871 = vmatprep.mubr.bf16.mxu0 %v490
    %872 = vmatmul.mubr.bf16.gmra.mrb[0].mxu0 %v489
    %v873 = vpop.f32.mrb[0].mxu0
    %v874 = vadd.f32 0.0, %v873
    %v875 = vpop.f32.mrb[0].mxu0
    %v876 = vpop.f32.mrb[0].mxu0
    %v877 = vadd.f32 0.0, %v876
    %v878 = vpop.f32.mrb[0].mxu0
    %879 = vmatprep.mubr.bf16.mxu0 %v492
    %880 = vmatmul.mubr.bf16.gmra.mrb[0].mxu0 %v491
    %v881 = vpop.f32.mrb[0].mxu0
    %v882 = vadd.f32 0.0, %v881
    %v883 = vpop.f32.mrb[0].mxu0
    %v884 = vpop.f32.mrb[0].mxu0
    %v885 = vadd.f32 0.0, %v884
    %v886 = vpop.f32.mrb[0].mxu0
    %887 = vmatprep.mubr.bf16.mxu0 %v494
    %888 = vmatmul.mubr.bf16.gmra.mrb[0].mxu0 %v493
    %v889 = vpop.f32.mrb[0].mxu0
    %v890 = vadd.f32 0.0, %v889
    %v891 = vpop.f32.mrb[0].mxu0
    %v892 = vpop.f32.mrb[0].mxu0
    %v893 = vadd.f32 0.0, %v892
    %v894 = vpop.f32.mrb[0].mxu0
    %895 = vmatprep.mubr.bf16.mxu0 %v496
    %896 = vmatmul.mubr.bf16.gmra.mrb[0].mxu0 %v495
    %v897 = vpop.f32.mrb[0].mxu0
    %v898 = vadd.f32 0.0, %v897
    %v899 = vpop.f32.mrb[0].mxu0
    %v900 = vpop.f32.mrb[0].mxu0
    %v901 = vadd.f32 0.0, %v900
    %v902 = vpop.f32.mrb[0].mxu0
    %903 = vmatprep.mubr.bf16.mxu0 %v498
    %904 = vmatmul.mubr.bf16.gmra.mrb[0].mxu0 %v497
    %v905 = vpop.f32.mrb[0].mxu0
    %v906 = vadd.f32 0.0, %v905
    %v907 = vpop.f32.mrb[0].mxu0
    %v908 = vpop.f32.mrb[0].mxu0
    %v909 = vadd.f32 0.0, %v908
    %v910 = vpop.f32.mrb[0].mxu0
    %911 = vmatprep.mubr.bf16.mxu0 %v500
    %912 = vmatmul.mubr.bf16.gmra.mrb[0].mxu0 %v499
    %v913 = vpop.f32.mrb[0].mxu0
    %v914 = vadd.f32 0.0, %v913
    %v915 = vpop.f32.mrb[0].mxu0
    %v916 = vpop.f32.mrb[0].mxu0
    %v917 = vadd.f32 0.0, %v916
    %v918 = vpop.f32.mrb[0].mxu0
    %919 = vmatprep.mubr.bf16.mxu0 %v502
    %920 = vmatmul.mubr.bf16.gmra.mrb[0].mxu0 %v501
    %v921 = vpop.f32.mrb[0].mxu0
    %v922 = vadd.f32 0.0, %v921
    %v923 = vpop.f32.mrb[0].mxu0
    %v924 = vpop.f32.mrb[0].mxu0
    %v925 = vadd.f32 0.0, %v924
    %v926 = vpop.f32.mrb[0].mxu0
    %927 = vmatprep.mubr.bf16.mxu0 %v504
    %928 = vmatmul.mubr.bf16.gmra.mrb[0].mxu0 %v503
    %v929 = vpop.f32.mrb[0].mxu0
    %v930 = vadd.f32 0.0, %v929
    %v931 = vpop.f32.mrb[0].mxu0
    %v932 = vpop.f32.mrb[0].mxu0
    %v933 = vadd.f32 0.0, %v932
    %v934 = vpop.f32.mrb[0].mxu0
    %935 = vmatprep.mubr.bf16.mxu0 %v506
    %936 = vmatmul.mubr.bf16.gmra.mrb[0].mxu0 %v505
    %v937 = vpop.f32.mrb[0].mxu0
    %v938 = vadd.f32 0.0, %v937
    %v939 = vpop.f32.mrb[0].mxu0
    %v940 = vpop.f32.mrb[0].mxu0
    %v941 = vadd.f32 0.0, %v940
    %v942 = vpop.f32.mrb[0].mxu0
    %943 = vmatprep.mubr.bf16.mxu0 %v508
    %944 = vmatmul.mubr.bf16.gmra.mrb[0].mxu0 %v507
    %v945 = vpop.f32.mrb[0].mxu0
    %v946 = vadd.f32 0.0, %v945
    %v947 = vpop.f32.mrb[0].mxu0
    %v948 = vpop.f32.mrb[0].mxu0
    %v949 = vadd.f32 0.0, %v948
    %v950 = vpop.f32.mrb[0].mxu0
    %951 = vmatprep.mubr.bf16.mxu0 %v510
    %952 = vmatmul.mubr.bf16.gmra.mrb[0].mxu0 %v509
    %v953 = vpop.f32.mrb[0].mxu0
    %v954 = vadd.f32 0.0, %v953
    %v955 = vpop.f32.mrb[0].mxu0
    %v956 = vpop.f32.mrb[0].mxu0
    %v957 = vadd.f32 0.0, %v956
    %v958 = vpop.f32.mrb[0].mxu0
    %959 = vdwg.mxu0
    %v960 = vadd.f32 %v95, %v706
    %v961 = vadd.f32 %v96, %v709
    %v962 = vadd.f32 %v97, %v714
    %v963 = vadd.f32 %v98, %v717
    %v964 = vadd.f32 %v99, %v722
    %v965 = vadd.f32 %v100, %v725
    %v966 = vadd.f32 %v101, %v730
    %v967 = vadd.f32 %v102, %v733
    %v968 = vadd.f32 %v103, %v738
    %v969 = vadd.f32 %v104, %v741
    %v970 = vadd.f32 %v105, %v746
    %v971 = vadd.f32 %v106, %v749
    %v972 = vadd.f32 %v107, %v754
    %v973 = vadd.f32 %v108, %v757
    %v974 = vadd.f32 %v109, %v762
    %v975 = vadd.f32 %v110, %v765
    %v976 = vadd.f32 %v111, %v770
    %v977 = vadd.f32 %v112, %v773
    %v978 = vadd.f32 %v113, %v778
    %v979 = vadd.f32 %v114, %v781
    %v980 = vadd.f32 %v115, %v786
    %v981 = vadd.f32 %v116, %v789
    %v982 = vadd.f32 %v117, %v794
    %v983 = vadd.f32 %v118, %v797
    %v984 = vadd.f32 %v119, %v802
    %v985 = vadd.f32 %v120, %v805
    %v986 = vadd.f32 %v121, %v810
    %v987 = vadd.f32 %v122, %v813
    %v988 = vadd.f32 %v123, %v818
    %v989 = vadd.f32 %v124, %v821
    %v990 = vadd.f32 %v125, %v826
    %v991 = vadd.f32 %v126, %v829
    %v992 = vadd.f32 %v127, %v834
    %v993 = vadd.f32 %v128, %v837
    %v994 = vadd.f32 %v129, %v842
    %v995 = vadd.f32 %v130, %v845
    %v996 = vadd.f32 %v131, %v850
    %v997 = vadd.f32 %v132, %v853
    %v998 = vadd.f32 %v133, %v858
    %v999 = vadd.f32 %v134, %v861
    %v1000 = vadd.f32 %v135, %v866
    %v1001 = vadd.f32 %v136, %v869
    %v1002 = vadd.f32 %v137, %v874
    %v1003 = vadd.f32 %v138, %v877
    %v1004 = vadd.f32 %v139, %v882
    %v1005 = vadd.f32 %v140, %v885
    %v1006 = vadd.f32 %v141, %v890
    %v1007 = vadd.f32 %v142, %v893
    %v1008 = vadd.f32 %v143, %v898
    %v1009 = vadd.f32 %v144, %v901
    %v1010 = vadd.f32 %v145, %v906
    %v1011 = vadd.f32 %v146, %v909
    %v1012 = vadd.f32 %v147, %v914
    %v1013 = vadd.f32 %v148, %v917
    %v1014 = vadd.f32 %v149, %v922
    %v1015 = vadd.f32 %v150, %v925
    %v1016 = vadd.f32 %v151, %v930
    %v1017 = vadd.f32 %v152, %v933
    %v1018 = vadd.f32 %v153, %v938
    %v1019 = vadd.f32 %v154, %v941
    %v1020 = vadd.f32 %v155, %v946
    %v1021 = vadd.f32 %v156, %v949
    %v1022 = vadd.f32 %v157, %v954
    %v1023 = vadd.f32 %v158, %v957
    %vm1024 = vcmask 523264
    %1025 = vst.msk [vmem:[#allocation2] sm:$0xff] %vm1024, %v960
    %1026 = vst.msk [vmem:[#allocation2 + $0x8] sm:$0xff] %vm1024, %v961
    %1027 = vst.msk [vmem:[#allocation2 + $0x10] sm:$0xff] %vm1024, %v962
    %1028 = vst.msk [vmem:[#allocation2 + $0x18] sm:$0xff] %vm1024, %v963
    %1029 = vst.msk [vmem:[#allocation2 + $0x20] sm:$0xff] %vm1024, %v964
    %1030 = vst.msk [vmem:[#allocation2 + $0x28] sm:$0xff] %vm1024, %v965
    %1031 = vst.msk [vmem:[#allocation2 + $0x30] sm:$0xff] %vm1024, %v966
    %1032 = vst.msk [vmem:[#allocation2 + $0x38] sm:$0xff] %vm1024, %v967
    %1033 = vst.msk [vmem:[#allocation2 + $0x40] sm:$0xff] %vm1024, %v968
    %1034 = vst.msk [vmem:[#allocation2 + $0x48] sm:$0xff] %vm1024, %v969
    %1035 = vst.msk [vmem:[#allocation2 + $0x50] sm:$0xff] %vm1024, %v970
    %1036 = vst.msk [vmem:[#allocation2 + $0x58] sm:$0xff] %vm1024, %v971
    %1037 = vst.msk [vmem:[#allocation2 + $0x60] sm:$0xff] %vm1024, %v972
    %1038 = vst.msk [vmem:[#allocation2 + $0x68] sm:$0xff] %vm1024, %v973
    %1039 = vst.msk [vmem:[#allocation2 + $0x70] sm:$0xff] %vm1024, %v974
    %1040 = vst.msk [vmem:[#allocation2 + $0x78] sm:$0xff] %vm1024, %v975
    %1041 = vst.msk [vmem:[#allocation2 + $0x80] sm:$0xff] %vm1024, %v976
    %1042 = vst.msk [vmem:[#allocation2 + $0x88] sm:$0xff] %vm1024, %v977
    %1043 = vst.msk [vmem:[#allocation2 + $0x90] sm:$0xff] %vm1024, %v978
    %1044 = vst.msk [vmem:[#allocation2 + $0x98] sm:$0xff] %vm1024, %v979
    %1045 = vst.msk [vmem:[#allocation2 + $0xa0] sm:$0xff] %vm1024, %v980
    %1046 = vst.msk [vmem:[#allocation2 + $0xa8] sm:$0xff] %vm1024, %v981
    %1047 = vst.msk [vmem:[#allocation2 + $0xb0] sm:$0xff] %vm1024, %v982
    %1048 = vst.msk [vmem:[#allocation2 + $0xb8] sm:$0xff] %vm1024, %v983
    %1049 = vst.msk [vmem:[#allocation2 + $0xc0] sm:$0xff] %vm1024, %v984
    %1050 = vst.msk [vmem:[#allocation2 + $0xc8] sm:$0xff] %vm1024, %v985
    %1051 = vst.msk [vmem:[#allocation2 + $0xd0] sm:$0xff] %vm1024, %v986
    %1052 = vst.msk [vmem:[#allocation2 + $0xd8] sm:$0xff] %vm1024, %v987
    %1053 = vst.msk [vmem:[#allocation2 + $0xe0] sm:$0xff] %vm1024, %v988
    %1054 = vst.msk [vmem:[#allocation2 + $0xe8] sm:$0xff] %vm1024, %v989
    %1055 = vst.msk [vmem:[#allocation2 + $0xf0] sm:$0xff] %vm1024, %v990
    %1056 = vst.msk [vmem:[#allocation2 + $0xf8] sm:$0xff] %vm1024, %v991
    %1057 = vst.msk [vmem:[#allocation2 + $0x100] sm:$0xff] %vm1024, %v992
    %1058 = vst.msk [vmem:[#allocation2 + $0x108] sm:$0xff] %vm1024, %v993
    %1059 = vst.msk [vmem:[#allocation2 + $0x110] sm:$0xff] %vm1024, %v994
    %1060 = vst.msk [vmem:[#allocation2 + $0x118] sm:$0xff] %vm1024, %v995
    %1061 = vst.msk [vmem:[#allocation2 + $0x120] sm:$0xff] %vm1024, %v996
    %1062 = vst.msk [vmem:[#allocation2 + $0x128] sm:$0xff] %vm1024, %v997
    %1063 = vst.msk [vmem:[#allocation2 + $0x130] sm:$0xff] %vm1024, %v998
    %1064 = vst.msk [vmem:[#allocation2 + $0x138] sm:$0xff] %vm1024, %v999
    %1065 = vst.msk [vmem:[#allocation2 + $0x140] sm:$0xff] %vm1024, %v1000
    %1066 = vst.msk [vmem:[#allocation2 + $0x148] sm:$0xff] %vm1024, %v1001
    %1067 = vst.msk [vmem:[#allocation2 + $0x150] sm:$0xff] %vm1024, %v1002
    %1068 = vst.msk [vmem:[#allocation2 + $0x158] sm:$0xff] %vm1024, %v1003
    %1069 = vst.msk [vmem:[#allocation2 + $0x160] sm:$0xff] %vm1024, %v1004
    %1070 = vst.msk [vmem:[#allocation2 + $0x168] sm:$0xff] %vm1024, %v1005
    %1071 = vst.msk [vmem:[#allocation2 + $0x170] sm:$0xff] %vm1024, %v1006
    %1072 = vst.msk [vmem:[#allocation2 + $0x178] sm:$0xff] %vm1024, %v1007
    %1073 = vst.msk [vmem:[#allocation2 + $0x180] sm:$0xff] %vm1024, %v1008
    %1074 = vst.msk [vmem:[#allocation2 + $0x188] sm:$0xff] %vm1024, %v1009
    %1075 = vst.msk [vmem:[#allocation2 + $0x190] sm:$0xff] %vm1024, %v1010
    %1076 = vst.msk [vmem:[#allocation2 + $0x198] sm:$0xff] %vm1024, %v1011
    %1077 = vst.msk [vmem:[#allocation2 + $0x1a0] sm:$0xff] %vm1024, %v1012
    %1078 = vst.msk [vmem:[#allocation2 + $0x1a8] sm:$0xff] %vm1024, %v1013
    %1079 = vst.msk [vmem:[#allocation2 + $0x1b0] sm:$0xff] %vm1024, %v1014
    %1080 = vst.msk [vmem:[#allocation2 + $0x1b8] sm:$0xff] %vm1024, %v1015
    %1081 = vst.msk [vmem:[#allocation2 + $0x1c0] sm:$0xff] %vm1024, %v1016
    %1082 = vst.msk [vmem:[#allocation2 + $0x1c8] sm:$0xff] %vm1024, %v1017
    %1083 = vst.msk [vmem:[#allocation2 + $0x1d0] sm:$0xff] %vm1024, %v1018
    %1084 = vst.msk [vmem:[#allocation2 + $0x1d8] sm:$0xff] %vm1024, %v1019
    %1085 = vst.msk [vmem:[#allocation2 + $0x1e0] sm:$0xff] %vm1024, %v1020
    %1086 = vst.msk [vmem:[#allocation2 + $0x1e8] sm:$0xff] %vm1024, %v1021
    %1087 = vst.msk [vmem:[#allocation2 + $0x1f0] sm:$0xff] %vm1024, %v1022
    %1088 = vst.msk [vmem:[#allocation2 + $0x1f8] sm:$0xff] %vm1024, %v1023
    // Predicated region
    $region18: #{tpu_custom_call.1} parent=1 // pred_check
      %p1089 = pneg %p26
    $region19: #{tpu_custom_call.1} parent=1 // pred_check_branch
      %1091 = sbr.rel (%p1089) target = $region21
    $region20: #{tpu_custom_call.1} parent=1 // pred_region
      %v1092 = vld [vmem:[#allocation2] sm:$0xff]
      %v1093 = vld [vmem:[#allocation2 + $0x8] sm:$0xff]
      %v1094 = vld [vmem:[#allocation2 + $0x10] sm:$0xff]
      %v1095 = vld [vmem:[#allocation2 + $0x18] sm:$0xff]
      %v1096 = vld [vmem:[#allocation2 + $0x20] sm:$0xff]
      %v1097 = vld [vmem:[#allocation2 + $0x28] sm:$0xff]
      %v1098 = vld [vmem:[#allocation2 + $0x30] sm:$0xff]
      %v1099 = vld [vmem:[#allocation2 + $0x38] sm:$0xff]
      %v1100 = vld [vmem:[#allocation2 + $0x40] sm:$0xff]
      %v1101 = vld [vmem:[#allocation2 + $0x48] sm:$0xff]
      %v1102 = vld [vmem:[#allocation2 + $0x50] sm:$0xff]
      %v1103 = vld [vmem:[#allocation2 + $0x58] sm:$0xff]
      %v1104 = vld [vmem:[#allocation2 + $0x60] sm:$0xff]
      %v1105 = vld [vmem:[#allocation2 + $0x68] sm:$0xff]
      %v1106 = vld [vmem:[#allocation2 + $0x70] sm:$0xff]
      %v1107 = vld [vmem:[#allocation2 + $0x78] sm:$0xff]
      %v1108 = vld [vmem:[#allocation2 + $0x80] sm:$0xff]
      %v1109 = vld [vmem:[#allocation2 + $0x88] sm:$0xff]
      %v1110 = vld [vmem:[#allocation2 + $0x90] sm:$0xff]
      %v1111 = vld [vmem:[#allocation2 + $0x98] sm:$0xff]
      %v1112 = vld [vmem:[#allocation2 + $0xa0] sm:$0xff]
      %v1113 = vld [vmem:[#allocation2 + $0xa8] sm:$0xff]
      %v1114 = vld [vmem:[#allocation2 + $0xb0] sm:$0xff]
      %v1115 = vld [vmem:[#allocation2 + $0xb8] sm:$0xff]
      %v1116 = vld [vmem:[#allocation2 + $0xc0] sm:$0xff]
      %v1117 = vld [vmem:[#allocation2 + $0xc8] sm:$0xff]
      %v1118 = vld [vmem:[#allocation2 + $0xd0] sm:$0xff]
      %v1119 = vld [vmem:[#allocation2 + $0xd8] sm:$0xff]
      %v1120 = vld [vmem:[#allocation2 + $0xe0] sm:$0xff]
      %v1121 = vld [vmem:[#allocation2 + $0xe8] sm:$0xff]
      %v1122 = vld [vmem:[#allocation2 + $0xf0] sm:$0xff]
      %v1123 = vld [vmem:[#allocation2 + $0xf8] sm:$0xff]
      %v1124 = vld [vmem:[#allocation2 + $0x100] sm:$0xff]
      %v1125 = vld [vmem:[#allocation2 + $0x108] sm:$0xff]
      %v1126 = vld [vmem:[#allocation2 + $0x110] sm:$0xff]
      %v1127 = vld [vmem:[#allocation2 + $0x118] sm:$0xff]
      %v1128 = vld [vmem:[#allocation2 + $0x120] sm:$0xff]
      %v1129 = vld [vmem:[#allocation2 + $0x128] sm:$0xff]
      %v1130 = vld [vmem:[#allocation2 + $0x130] sm:$0xff]
      %v1131 = vld [vmem:[#allocation2 + $0x138] sm:$0xff]
      %v1132 = vld [vmem:[#allocation2 + $0x140] sm:$0xff]
      %v1133 = vld [vmem:[#allocation2 + $0x148] sm:$0xff]
      %v1134 = vld [vmem:[#allocation2 + $0x150] sm:$0xff]
      %v1135 = vld [vmem:[#allocation2 + $0x158] sm:$0xff]
      %v1136 = vld [vmem:[#allocation2 + $0x160] sm:$0xff]
      %v1137 = vld [vmem:[#allocation2 + $0x168] sm:$0xff]
      %v1138 = vld [vmem:[#allocation2 + $0x170] sm:$0xff]
      %v1139 = vld [vmem:[#allocation2 + $0x178] sm:$0xff]
      %v1140 = vld [vmem:[#allocation2 + $0x180] sm:$0xff]
      %v1141 = vld [vmem:[#allocation2 + $0x188] sm:$0xff]
      %v1142 = vld [vmem:[#allocation2 + $0x190] sm:$0xff]
      %v1143 = vld [vmem:[#allocation2 + $0x198] sm:$0xff]
      %v1144 = vld [vmem:[#allocation2 + $0x1a0] sm:$0xff]
      %v1145 = vld [vmem:[#allocation2 + $0x1a8] sm:$0xff]
      %v1146 = vld [vmem:[#allocation2 + $0x1b0] sm:$0xff]
      %v1147 = vld [vmem:[#allocation2 + $0x1b8] sm:$0xff]
      %v1148 = vld [vmem:[#allocation2 + $0x1c0] sm:$0xff]
      %v1149 = vld [vmem:[#allocation2 + $0x1c8] sm:$0xff]
      %v1150 = vld [vmem:[#allocation2 + $0x1d0] sm:$0xff]
      %v1151 = vld [vmem:[#allocation2 + $0x1d8] sm:$0xff]
      %v1152 = vld [vmem:[#allocation2 + $0x1e0] sm:$0xff]
      %v1153 = vld [vmem:[#allocation2 + $0x1e8] sm:$0xff]
      %v1154 = vld [vmem:[#allocation2 + $0x1f0] sm:$0xff]
      %v1155 = vld [vmem:[#allocation2 + $0x1f8] sm:$0xff]
      %v1156 = vpack.c.bf16 %v1093, %v1092
      %v1157 = vpack.c.bf16 %v1095, %v1094
      %v1158 = vpack.c.bf16 %v1097, %v1096
      %v1159 = vpack.c.bf16 %v1099, %v1098
      %v1160 = vpack.c.bf16 %v1101, %v1100
      %v1161 = vpack.c.bf16 %v1103, %v1102
      %v1162 = vpack.c.bf16 %v1105, %v1104
      %v1163 = vpack.c.bf16 %v1107, %v1106
      %v1164 = vpack.c.bf16 %v1109, %v1108
      %v1165 = vpack.c.bf16 %v1111, %v1110
      %v1166 = vpack.c.bf16 %v1113, %v1112
      %v1167 = vpack.c.bf16 %v1115, %v1114
      %v1168 = vpack.c.bf16 %v1117, %v1116
      %v1169 = vpack.c.bf16 %v1119, %v1118
      %v1170 = vpack.c.bf16 %v1121, %v1120
      %v1171 = vpack.c.bf16 %v1123, %v1122
      %v1172 = vpack.c.bf16 %v1125, %v1124
      %v1173 = vpack.c.bf16 %v1127, %v1126
      %v1174 = vpack.c.bf16 %v1129, %v1128
      %v1175 = vpack.c.bf16 %v1131, %v1130
      %v1176 = vpack.c.bf16 %v1133, %v1132
      %v1177 = vpack.c.bf16 %v1135, %v1134
      %v1178 = vpack.c.bf16 %v1137, %v1136
      %v1179 = vpack.c.bf16 %v1139, %v1138
      %v1180 = vpack.c.bf16 %v1141, %v1140
      %v1181 = vpack.c.bf16 %v1143, %v1142
      %v1182 = vpack.c.bf16 %v1145, %v1144
      %v1183 = vpack.c.bf16 %v1147, %v1146
      %v1184 = vpack.c.bf16 %v1149, %v1148
      %v1185 = vpack.c.bf16 %v1151, %v1150
      %v1186 = vpack.c.bf16 %v1153, %v1152
      %v1187 = vpack.c.bf16 %v1155, %v1154
      %v1220 = vunpack.c.l.b16 %v1156
      %v1221 = vunpack.c.h.b16 %v1156
      %v1222 = vunpack.c.l.b16 %v1157
      %v1223 = vunpack.c.h.b16 %v1157
      %v1224 = vunpack.c.l.b16 %v1158
      %v1225 = vunpack.c.h.b16 %v1158
      %v1226 = vunpack.c.l.b16 %v1159
      %v1227 = vunpack.c.h.b16 %v1159
      %v1228 = vunpack.c.l.b16 %v1160
      %v1229 = vunpack.c.h.b16 %v1160
      %v1230 = vunpack.c.l.b16 %v1161
      %v1231 = vunpack.c.h.b16 %v1161
      %v1232 = vunpack.c.l.b16 %v1162
      %v1233 = vunpack.c.h.b16 %v1162
      %v1234 = vunpack.c.l.b16 %v1163
      %v1235 = vunpack.c.h.b16 %v1163
      %v1236 = vunpack.c.l.b16 %v1164
      %v1237 = vunpack.c.h.b16 %v1164
      %v1238 = vunpack.c.l.b16 %v1165
      %v1239 = vunpack.c.h.b16 %v1165
      %v1240 = vunpack.c.l.b16 %v1166
      %v1241 = vunpack.c.h.b16 %v1166
      %v1242 = vunpack.c.l.b16 %v1167
      %v1243 = vunpack.c.h.b16 %v1167
      %v1244 = vunpack.c.l.b16 %v1168
      %v1245 = vunpack.c.h.b16 %v1168
      %v1246 = vunpack.c.l.b16 %v1169
      %v1247 = vunpack.c.h.b16 %v1169
      %v1248 = vunpack.c.l.b16 %v1170
      %v1249 = vunpack.c.h.b16 %v1170
      %v1250 = vunpack.c.l.b16 %v1171
      %v1251 = vunpack.c.h.b16 %v1171
      %v1252 = vunpack.c.l.b16 %v1172
      %v1253 = vunpack.c.h.b16 %v1172
      %v1254 = vunpack.c.l.b16 %v1173
      %v1255 = vunpack.c.h.b16 %v1173
      %v1256 = vunpack.c.l.b16 %v1174
      %v1257 = vunpack.c.h.b16 %v1174
      %v1258 = vunpack.c.l.b16 %v1175
      %v1259 = vunpack.c.h.b16 %v1175
      %v1260 = vunpack.c.l.b16 %v1176
      %v1261 = vunpack.c.h.b16 %v1176
      %v1262 = vunpack.c.l.b16 %v1177
      %v1263 = vunpack.c.h.b16 %v1177
      %v1264 = vunpack.c.l.b16 %v1178
      %v1265 = vunpack.c.h.b16 %v1178
      %v1266 = vunpack.c.l.b16 %v1179
      %v1267 = vunpack.c.h.b16 %v1179
      %v1268 = vunpack.c.l.b16 %v1180
      %v1269 = vunpack.c.h.b16 %v1180
      %v1270 = vunpack.c.l.b16 %v1181
      %v1271 = vunpack.c.h.b16 %v1181
      %v1272 = vunpack.c.l.b16 %v1182
      %v1273 = vunpack.c.h.b16 %v1182
      %v1274 = vunpack.c.l.b16 %v1183
      %v1275 = vunpack.c.h.b16 %v1183
      %v1276 = vunpack.c.l.b16 %v1184
      %v1277 = vunpack.c.h.b16 %v1184
      %v1278 = vunpack.c.l.b16 %v1185
      %v1279 = vunpack.c.h.b16 %v1185
      %v1280 = vunpack.c.l.b16 %v1186
      %v1281 = vunpack.c.h.b16 %v1186
      %v1282 = vunpack.c.l.b16 %v1187
      %v1283 = vunpack.c.h.b16 %v1187
      %v1284 = vpack.c.b16 %v1220, %v1220
      %v1285 = vpack.c.b16 %v1221, %v1221
      %v1286 = vpack.c.b16 %v1222, %v1222
      %v1287 = vpack.c.b16 %v1223, %v1223
      %v1288 = vpack.c.b16 %v1224, %v1224
      %v1289 = vpack.c.b16 %v1225, %v1225
      %v1290 = vpack.c.b16 %v1226, %v1226
      %v1291 = vpack.c.b16 %v1227, %v1227
      %v1292 = vpack.c.b16 %v1228, %v1228
      %v1293 = vpack.c.b16 %v1229, %v1229
      %v1294 = vpack.c.b16 %v1230, %v1230
      %v1295 = vpack.c.b16 %v1231, %v1231
      %v1296 = vpack.c.b16 %v1232, %v1232
      %v1297 = vpack.c.b16 %v1233, %v1233
      %v1298 = vpack.c.b16 %v1234, %v1234
      %v1299 = vpack.c.b16 %v1235, %v1235
      %v1300 = vpack.c.b16 %v1236, %v1236
      %v1301 = vpack.c.b16 %v1237, %v1237
      %v1302 = vpack.c.b16 %v1238, %v1238
      %v1303 = vpack.c.b16 %v1239, %v1239
      %v1304 = vpack.c.b16 %v1240, %v1240
      %v1305 = vpack.c.b16 %v1241, %v1241
      %v1306 = vpack.c.b16 %v1242, %v1242
      %v1307 = vpack.c.b16 %v1243, %v1243
      %v1308 = vpack.c.b16 %v1244, %v1244
      %v1309 = vpack.c.b16 %v1245, %v1245
      %v1310 = vpack.c.b16 %v1246, %v1246
      %v1311 = vpack.c.b16 %v1247, %v1247
      %v1312 = vpack.c.b16 %v1248, %v1248
      %v1313 = vpack.c.b16 %v1249, %v1249
      %v1314 = vpack.c.b16 %v1250, %v1250
      %v1315 = vpack.c.b16 %v1251, %v1251
      %v1316 = vpack.c.b16 %v1252, %v1252
      %v1317 = vpack.c.b16 %v1253, %v1253
      %v1318 = vpack.c.b16 %v1254, %v1254
      %v1319 = vpack.c.b16 %v1255, %v1255
      %v1320 = vpack.c.b16 %v1256, %v1256
      %v1321 = vpack.c.b16 %v1257, %v1257
      %v1322 = vpack.c.b16 %v1258, %v1258
      %v1323 = vpack.c.b16 %v1259, %v1259
      %v1324 = vpack.c.b16 %v1260, %v1260
      %v1325 = vpack.c.b16 %v1261, %v1261
      %v1326 = vpack.c.b16 %v1262, %v1262
      %v1327 = vpack.c.b16 %v1263, %v1263
      %v1328 = vpack.c.b16 %v1264, %v1264
      %v1329 = vpack.c.b16 %v1265, %v1265
      %v1330 = vpack.c.b16 %v1266, %v1266
      %v1331 = vpack.c.b16 %v1267, %v1267
      %v1332 = vpack.c.b16 %v1268, %v1268
      %v1333 = vpack.c.b16 %v1269, %v1269
      %v1334 = vpack.c.b16 %v1270, %v1270
      %v1335 = vpack.c.b16 %v1271, %v1271
      %v1336 = vpack.c.b16 %v1272, %v1272
      %v1337 = vpack.c.b16 %v1273, %v1273
      %v1338 = vpack.c.b16 %v1274, %v1274
      %v1339 = vpack.c.b16 %v1275, %v1275
      %v1340 = vpack.c.b16 %v1276, %v1276
      %v1341 = vpack.c.b16 %v1277, %v1277
      %v1342 = vpack.c.b16 %v1278, %v1278
      %v1343 = vpack.c.b16 %v1279, %v1279
      %v1344 = vpack.c.b16 %v1280, %v1280
      %v1345 = vpack.c.b16 %v1281, %v1281
      %v1346 = vpack.c.b16 %v1282, %v1282
      %v1347 = vpack.c.b16 %v1283, %v1283
      %vm1412 = vcmask 519168
      %1413 = vst.msk [vmem:[%s2] sm:$0xf] %vm1412, %v1284
      %1414 = vst.msk [vmem:[%s2 + $0x4] sm:$0xf] %vm1412, %v1285
      %1415 = vst.msk [vmem:[%s2 + $0x8] sm:$0xf] %vm1412, %v1286
      %1416 = vst.msk [vmem:[%s2 + $0xc] sm:$0xf] %vm1412, %v1287
      %1417 = vst.msk [vmem:[%s2 + $0x10] sm:$0xf] %vm1412, %v1288
      %1418 = vst.msk [vmem:[%s2 + $0x14] sm:$0xf] %vm1412, %v1289
      %1419 = vst.msk [vmem:[%s2 + $0x18] sm:$0xf] %vm1412, %v1290
      %1420 = vst.msk [vmem:[%s2 + $0x1c] sm:$0xf] %vm1412, %v1291
      %1421 = vst.msk [vmem:[%s2 + $0x20] sm:$0xf] %vm1412, %v1292
      %1422 = vst.msk [vmem:[%s2 + $0x24] sm:$0xf] %vm1412, %v1293
      %1423 = vst.msk [vmem:[%s2 + $0x28] sm:$0xf] %vm1412, %v1294
      %1424 = vst.msk [vmem:[%s2 + $0x2c] sm:$0xf] %vm1412, %v1295
      %1425 = vst.msk [vmem:[%s2 + $0x30] sm:$0xf] %vm1412, %v1296
      %1426 = vst.msk [vmem:[%s2 + $0x34] sm:$0xf] %vm1412, %v1297
      %1427 = vst.msk [vmem:[%s2 + $0x38] sm:$0xf] %vm1412, %v1298
      %1428 = vst.msk [vmem:[%s2 + $0x3c] sm:$0xf] %vm1412, %v1299
      %1429 = vst.msk [vmem:[%s2 + $0x40] sm:$0xf] %vm1412, %v1300
      %1430 = vst.msk [vmem:[%s2 + $0x44] sm:$0xf] %vm1412, %v1301
      %1431 = vst.msk [vmem:[%s2 + $0x48] sm:$0xf] %vm1412, %v1302
      %1432 = vst.msk [vmem:[%s2 + $0x4c] sm:$0xf] %vm1412, %v1303
      %1433 = vst.msk [vmem:[%s2 + $0x50] sm:$0xf] %vm1412, %v1304
      %1434 = vst.msk [vmem:[%s2 + $0x54] sm:$0xf] %vm1412, %v1305
      %1435 = vst.msk [vmem:[%s2 + $0x58] sm:$0xf] %vm1412, %v1306
      %1436 = vst.msk [vmem:[%s2 + $0x5c] sm:$0xf] %vm1412, %v1307
      %1437 = vst.msk [vmem:[%s2 + $0x60] sm:$0xf] %vm1412, %v1308
      %1438 = vst.msk [vmem:[%s2 + $0x64] sm:$0xf] %vm1412, %v1309
      %1439 = vst.msk [vmem:[%s2 + $0x68] sm:$0xf] %vm1412, %v1310
      %1440 = vst.msk [vmem:[%s2 + $0x6c] sm:$0xf] %vm1412, %v1311
      %1441 = vst.msk [vmem:[%s2 + $0x70] sm:$0xf] %vm1412, %v1312
      %1442 = vst.msk [vmem:[%s2 + $0x74] sm:$0xf] %vm1412, %v1313
      %1443 = vst.msk [vmem:[%s2 + $0x78] sm:$0xf] %vm1412, %v1314
      %1444 = vst.msk [vmem:[%s2 + $0x7c] sm:$0xf] %vm1412, %v1315
      %1445 = vst.msk [vmem:[%s2 + $0x80] sm:$0xf] %vm1412, %v1316
      %1446 = vst.msk [vmem:[%s2 + $0x84] sm:$0xf] %vm1412, %v1317
      %1447 = vst.msk [vmem:[%s2 + $0x88] sm:$0xf] %vm1412, %v1318
      %1448 = vst.msk [vmem:[%s2 + $0x8c] sm:$0xf] %vm1412, %v1319
      %1449 = vst.msk [vmem:[%s2 + $0x90] sm:$0xf] %vm1412, %v1320
      %1450 = vst.msk [vmem:[%s2 + $0x94] sm:$0xf] %vm1412, %v1321
      %1451 = vst.msk [vmem:[%s2 + $0x98] sm:$0xf] %vm1412, %v1322
      %1452 = vst.msk [vmem:[%s2 + $0x9c] sm:$0xf] %vm1412, %v1323
      %1453 = vst.msk [vmem:[%s2 + $0xa0] sm:$0xf] %vm1412, %v1324
      %1454 = vst.msk [vmem:[%s2 + $0xa4] sm:$0xf] %vm1412, %v1325
      %1455 = vst.msk [vmem:[%s2 + $0xa8] sm:$0xf] %vm1412, %v1326
      %1456 = vst.msk [vmem:[%s2 + $0xac] sm:$0xf] %vm1412, %v1327
      %1457 = vst.msk [vmem:[%s2 + $0xb0] sm:$0xf] %vm1412, %v1328
      %1458 = vst.msk [vmem:[%s2 + $0xb4] sm:$0xf] %vm1412, %v1329
      %1459 = vst.msk [vmem:[%s2 + $0xb8] sm:$0xf] %vm1412, %v1330
      %1460 = vst.msk [vmem:[%s2 + $0xbc] sm:$0xf] %vm1412, %v1331
      %1461 = vst.msk [vmem:[%s2 + $0xc0] sm:$0xf] %vm1412, %v1332
      %1462 = vst.msk [vmem:[%s2 + $0xc4] sm:$0xf] %vm1412, %v1333
      %1463 = vst.msk [vmem:[%s2 + $0xc8] sm:$0xf] %vm1412, %v1334
      %1464 = vst.msk [vmem:[%s2 + $0xcc] sm:$0xf] %vm1412, %v1335
      %1465 = vst.msk [vmem:[%s2 + $0xd0] sm:$0xf] %vm1412, %v1336
      %1466 = vst.msk [vmem:[%s2 + $0xd4] sm:$0xf] %vm1412, %v1337
      %1467 = vst.msk [vmem:[%s2 + $0xd8] sm:$0xf] %vm1412, %v1338
      %1468 = vst.msk [vmem:[%s2 + $0xdc] sm:$0xf] %vm1412, %v1339
      %1469 = vst.msk [vmem:[%s2 + $0xe0] sm:$0xf] %vm1412, %v1340
      %1470 = vst.msk [vmem:[%s2 + $0xe4] sm:$0xf] %vm1412, %v1341
      %1471 = vst.msk [vmem:[%s2 + $0xe8] sm:$0xf] %vm1412, %v1342
      %1472 = vst.msk [vmem:[%s2 + $0xec] sm:$0xf] %vm1412, %v1343
      %1473 = vst.msk [vmem:[%s2 + $0xf0] sm:$0xf] %vm1412, %v1344
      %1474 = vst.msk [vmem:[%s2 + $0xf4] sm:$0xf] %vm1412, %v1345
      %1475 = vst.msk [vmem:[%s2 + $0xf8] sm:$0xf] %vm1412, %v1346
      %1476 = vst.msk [vmem:[%s2 + $0xfc] sm:$0xf] %vm1412, %v1347
    $region21: #{tpu_custom_call.1} parent=1 // pred_fallthru
      _
    // Predicated region
    $region22: #{tpu_custom_call.1} parent=1 // pred_check
      _
    $region23: #{tpu_custom_call.1} parent=1 // pred_check_branch
      %1478 = sbr.rel (0) target = $region25
    $region24: #{tpu_custom_call.1} parent=1 // pred_region
      _
    $region25: #{tpu_custom_call.1} parent=1 // pred_fallthru
      _
    // Predicated region
    $region26: #{tpu_custom_call.1} parent=1 // pred_check
      _
    $region27: #{tpu_custom_call.1} parent=1 // pred_check_branch
      %1480 = sbr.rel (0) target = $region29
    $region28: #{tpu_custom_call.1} parent=1 // pred_region
      _
    $region29: #{tpu_custom_call.1} parent=1 // pred_fallthru
      _
    %1481 = vsyncpa [#allocation4], 1

</llo_original>
